<compile_context>
chip_gen: v6e
topology: v6e:2x2x1
jax: 0.10.0
libtpu: 0.0.40
codegen_flags: <defaults>
</compile_context>

<pallas_src>
import functools

import jax
import jax.numpy as jnp
from jax import lax
from jax.experimental import pallas as pl
from jax.experimental.pallas import tpu as pltpu

LANE = 128


def _round_up(a, b):
    return (a + b - 1) // b * b


def _vmem_budget_bytes():
    """~85% of physical VMEM (headroom for Mosaic internal scratch)."""
    try:
        cap = getattr(pltpu.get_tpu_info(), "vmem_capacity_bytes", None)
    except Exception:
        cap = None
    if not cap:
        cap = 64 * 2 ** 20   # conservative fallback (v7x physical size)
    return int(cap * 0.85)


def gnn_kernel(x_ref, adj_ref,
               w_in_ref, b_in_ref,
               w_msg_ref, b_msg_ref,
               w_upd_ref, b_upd_ref,
               w_o1_ref, b_o1_ref,
               w_head_ref, b_head_ref,
               out_ref,
               state_sc, msg_sc, acc_sc,
               *, num_real_out):
    r = pl.program_id(0)            # message-passing round
    i = pl.program_id(1)            # destination-node row block
    k = pl.program_id(2)            # source-node column block (K reduction)
    nb = pl.num_programs(1)
    nb_k = pl.num_programs(2)
    last_r = pl.num_programs(0) - 1
    tn = acc_sc.shape[0]
    bf = jnp.bfloat16

    # ---- Round-0 prologue (first grid point only): input_net + msg[0]. -----
    # Done per row block so intermediates stay (tn, s_pad) sized.
    @pl.when((r == 0) & (i == 0) & (k == 0))
    def _():
        w_in = w_in_ref[...]
        b_in = b_in_ref[...]
        wm0 = w_msg_ref[0]
        bm0 = b_msg_ref[0]

        @pl.loop(0, nb)
        def _(blk):
            off = pl.multiple_of(blk * tn, tn)
            st0 = jnp.maximum(
                jnp.dot(x_ref[pl.ds(off, tn), :], w_in,
                        preferred_element_type=jnp.float32) + b_in, 0.0)
            state_sc[pl.ds(off, tn), :] = st0
            msg_sc[blk] = jnp.maximum(
                jnp.dot(st0.astype(bf), wm0,
                        preferred_element_type=jnp.float32) + bm0,
                0.0).astype(bf)

    # ---- K-reduction: agg[i] += A[i, k] @ msg_r[k]  (dense scatter-add). ---
    @pl.when(k == 0)
    def _():
        acc_sc[...] = jnp.zeros_like(acc_sc)

    acc_sc[...] += jnp.dot(adj_ref[...], msg_sc[(r % 2) * nb + k],
                           preferred_element_type=jnp.float32)

    # ---- Per-row-block epilogue (end of K-reduction): residual update, -----
    # then either next-round message precompute (hidden under the adjacency
    # stream of the remaining row blocks) or, on the last round, the head.
    @pl.when(k == nb_k - 1)
    def _():
        ioff = pl.multiple_of(i * tn, tn)
        upd = jnp.maximum(
            jnp.dot(acc_sc[...].astype(bf), w_upd_ref[r],
                    preferred_element_type=jnp.float32) + b_upd_ref[r], 0.0)
        st = state_sc[pl.ds(ioff, tn), :] + upd
        state_sc[pl.ds(ioff, tn), :] = st

        @pl.when(r < last_r)
        def _():
            rn = jnp.minimum(r + 1, last_r)
            nxt = jnp.maximum(
                jnp.dot(st.astype(bf), w_msg_ref[rn],
                        preferred_element_type=jnp.float32) + b_msg_ref[rn],
                0.0)
            msg_sc[((r + 1) % 2) * nb + i] = nxt.astype(bf)

        @pl.when(r == last_r)
        def _():
            h = jnp.maximum(
                jnp.dot(st.astype(bf), w_o1_ref[...],
                        preferred_element_type=jnp.float32) + b_o1_ref[...],
                0.0)
            o = jnp.dot(h.astype(bf), w_head_ref[...],
                        preferred_element_type=jnp.float32) + b_head_ref[...]
            # cols [0:D) = mean, [D:2D) = logvar -> std = exp(logvar);
            # remaining padding lanes are sliced off in the wrapper.
            col = lax.broadcasted_iota(jnp.int32, o.shape, 1)
            out_ref[...] = jnp.where(col >= num_real_out, jnp.exp(o), o)


@functools.partial(jax.jit, static_argnames=("output_dim", "tile_n"))
def simple_gnn_forward(x, edge_index, params, output_dim=1, tile_n=None):
    n, f = x.shape
    sdim = params["w_in"].shape[1]
    rounds = params["w_msg"].shape[0]

    f_pad = _round_up(f, LANE)
    s_pad = _round_up(sdim, LANE)
    o_pad = _round_up(2 * output_dim, LANE)
    bf = jnp.bfloat16

    # ---- Per-generation adjacency tile / VMEM sizing (kernel is HBM-bound on
    # adjacency streaming, so biggest tile the VMEM budget allows). ----------
    budget = _vmem_budget_bytes()
    tile_cap = 1024 if budget >= (80 << 20) else 512   # v5e/v6e vs v7x

    def vmem_need(tn_, n_pad_):
        dbl = 2   # pipeline double-buffering
        stream = dbl * (
            tn_ * tn_ * 2                              # adjacency tile (bf16)
            + n_pad_ * f_pad * 2                       # x (bf16)
            + f_pad * s_pad * 2 + 8 * s_pad * 4        # w_in / b_in
            + 2 * rounds * s_pad * s_pad * 2           # w_msg + w_upd stacks
            + 2 * rounds * 8 * s_pad * 4               # b_msg + b_upd stacks
            + s_pad * s_pad * 2 + 8 * s_pad * 4        # w_o1 / b_o1
            + s_pad * o_pad * 2 + 8 * o_pad * 4        # w_head / b_head
            + tn_ * o_pad * 4)                         # output block
        scratch = (n_pad_ * s_pad * 4                  # node state (f32)
                   + 2 * n_pad_ * s_pad * 2            # msg double buffer
                   + tn_ * s_pad * 4)                  # agg accumulator
        return stream + scratch

    if tile_n is None:
        tn = min(tile_cap, _round_up(n, LANE))
    else:
        tn = max(LANE, _round_up(tile_n, LANE))
    while True:
        n_pad = _round_up(n, tn)
        need = vmem_need(tn, n_pad)
        if need <= budget or tn <= LANE:
            break
        tn = max(LANE, (tn // 2) // LANE * LANE)
    nb = n_pad // tn
    vmem_limit = int(min(budget, max(32 << 20, need + (8 << 20))))

    # ---- Dense block-tiled adjacency: A[to, from] += 1 per edge (duplicate
    # edges accumulate == index_add).  Built directly in bf16 (exact for edge
    # multiplicities <= 256) in (nb, nb, tn, tn) block-contiguous layout so
    # every kernel DMA is one contiguous tile transfer. ----------------------
    to, frm = edge_index[1], edge_index[0]
    adj = jnp.zeros((nb, nb, tn, tn), bf)
    adj = adj.at[to // tn, frm // tn, to % tn, frm % tn].add(
        jnp.ones(edge_index.shape[1], bf))

    xp = jnp.zeros((n_pad, f_pad), bf).at[:n, :f].set(x.astype(bf))

    def pad2(w, rows, cols, dtype):
        return (jnp.zeros((rows, cols), dtype)
                .at[:w.shape[0], :w.shape[1]].set(w.astype(dtype)))

    def pad3(w, c1, c2, dtype):
        return (jnp.zeros((w.shape[0], c1, c2), dtype)
                .at[:, :w.shape[1], :w.shape[2]].set(w.astype(dtype)))

    w_in = pad2(params["w_in"], f_pad, s_pad, bf)
    b_in = pad2(params["b_in"], 1, s_pad, jnp.float32)
    w_msg = pad3(params["w_msg"], s_pad, s_pad, bf)
    b_msg = pad3(params["b_msg"], 1, s_pad, jnp.float32)
    w_upd = pad3(params["w_upd"], s_pad, s_pad, bf)
    b_upd = pad3(params["b_upd"], 1, s_pad, jnp.float32)
    w_o1 = pad2(params["w_o1"], s_pad, s_pad, bf)
    b_o1 = pad2(params["b_o1"], 1, s_pad, jnp.float32)

    # Fused mean/logvar head: single lane-dense (s_pad, o_pad) weight + bias.
    w_head = jnp.zeros((s_pad, o_pad), bf)
    w_head = w_head.at[:sdim, :output_dim].set(params["w_mean"].astype(bf))
    w_head = w_head.at[:sdim, output_dim:2 * output_dim].set(
        params["w_lv"].astype(bf))
    b_head = jnp.zeros((1, o_pad), jnp.float32)
    b_head = b_head.at[:, :output_dim].set(params["b_mean"])
    b_head = b_head.at[:, output_dim:2 * output_dim].set(params["b_lv"])

    c2 = lambda rr, ii, kk: (0, 0)
    c3 = lambda rr, ii, kk: (0, 0, 0)
    last_r = rounds - 1

    in_specs = [
        pl.BlockSpec((n_pad, f_pad), c2),                                   # x
        pl.BlockSpec((None, None, tn, tn),
                     lambda rr, ii, kk: (ii, kk, 0, 0)),                    # adj tile
        pl.BlockSpec((f_pad, s_pad), c2),                                   # w_in
        pl.BlockSpec((1, s_pad), c2),                                       # b_in
        pl.BlockSpec((rounds, s_pad, s_pad), c3),                           # w_msg (all rounds)
        pl.BlockSpec((rounds, 1, s_pad), c3),                               # b_msg
        pl.BlockSpec((rounds, s_pad, s_pad), c3),                           # w_upd
        pl.BlockSpec((rounds, 1, s_pad), c3),                               # b_upd
        pl.BlockSpec((s_pad, s_pad), c2),                                   # w_o1
        pl.BlockSpec((1, s_pad), c2),                                       # b_o1
        pl.BlockSpec((s_pad, o_pad), c2),                                   # w_head (fused)
        pl.BlockSpec((1, o_pad), c2),                                       # b_head (fused)
    ]
    # Per-row-block lane-dense output; the block index only advances during
    # the final round, so each (tn, o_pad) HBM slab is written exactly once.
    out_spec = pl.BlockSpec(
        (tn, o_pad), lambda rr, ii, kk: (jnp.where(rr == last_r, ii, 0), 0))

    scratch_shapes = [
        pltpu.VMEM((n_pad, s_pad), jnp.float32),        # node states (f32 residual)
        pltpu.VMEM((2 * nb, tn, s_pad), jnp.bfloat16),  # messages: 2 slots x nb blocks
        pltpu.VMEM((tn, s_pad), jnp.float32),           # aggregation accumulator
    ]

    out = pl.pallas_call(
        functools.partial(gnn_kernel, num_real_out=output_dim),
        out_shape=jax.ShapeDtypeStruct((n_pad, o_pad), jnp.float32),
        grid_spec=pltpu.PrefetchScalarGridSpec(
            num_scalar_prefetch=0,
            grid=(rounds, nb, nb),
            in_specs=in_specs,
            out_specs=out_spec,
            scratch_shapes=scratch_shapes),
        compiler_params=pltpu.CompilerParams(
            # TODO(synk): v7x 2-TC split of the row-block axis requires
            #             per-core message/state replication; kept sequential.
            dimension_semantics=("arbitrary", "arbitrary", "arbitrary"),
            vmem_limit_bytes=vmem_limit),
    )(xp, adj, w_in, b_in, w_msg, b_msg, w_upd, b_upd, w_o1, b_o1,
      w_head, b_head)

    mean = out[:n, :output_dim]
    std = out[:n, output_dim:2 * output_dim]
    return mean, std


def init_params(key, node_feature_dim, state_dim, num_rounds, output_dim):
    ks = jax.random.split(key, 12)
    s = 0.1
    return {
        "w_in": s * jax.random.normal(ks[0], (node_feature_dim, state_dim), jnp.float32),
        "b_in": s * jax.random.normal(ks[1], (1, state_dim), jnp.float32),
        "w_msg": s * jax.random.normal(ks[2], (num_rounds, state_dim, state_dim), jnp.float32),
        "b_msg": s * jax.random.normal(ks[3], (num_rounds, 1, state_dim), jnp.float32),
        "w_upd": s * jax.random.normal(ks[4], (num_rounds, state_dim, state_dim), jnp.float32),
        "b_upd": s * jax.random.normal(ks[5], (num_rounds, 1, state_dim), jnp.float32),
        "w_o1": s * jax.random.normal(ks[6], (state_dim, state_dim), jnp.float32),
        "b_o1": s * jax.random.normal(ks[7], (1, state_dim), jnp.float32),
        "w_mean": s * jax.random.normal(ks[8], (state_dim, output_dim), jnp.float32),
        "b_mean": s * jax.random.normal(ks[9], (1, output_dim), jnp.float32),
        "w_lv": s * jax.random.normal(ks[10], (state_dim, output_dim), jnp.float32),
        "b_lv": s * jax.random.normal(ks[11], (1, output_dim), jnp.float32),
    }


def reference_forward(x, edge_index, params, output_dim=1):
    """Pure-JAX f32 reference mirroring the PyTorch module (gather + index_add)."""
    num_nodes = x.shape[0]
    relu = lambda v: jnp.maximum(v, 0.0)
    state = relu(x @ params["w_in"] + params["b_in"])
    for r in range(params["w_msg"].shape[0]):
        message = relu(state @ params["w_msg"][r] + params["b_msg"][r])
        aggregated = jnp.zeros((num_nodes, state.shape[1]), jnp.float32)
        aggregated = aggregated.at[edge_index[1]].add(message[edge_index[0]])
        state = state + relu(aggregated @ params["w_upd"][r] + params["b_upd"][r])
    h = relu(state @ params["w_o1"] + params["b_o1"])
    mean = h @ params["w_mean"] + params["b_mean"]
    logvar = h @ params["w_lv"] + params["b_lv"]
    # NOTE: std = exp(logvar) (not exp(0.5*logvar)) to match the PyTorch spec.
    return mean, jnp.exp(logvar)


if __name__ == "__main__":
    node_feature_dim = 8
    state_dim = 32
    num_message_passing_rounds = 3
    output_dim = 1
    num_nodes = 16
    num_edges = 48

    key = jax.random.PRNGKey(0)
    k_x, k_e, k_p = jax.random.split(key, 3)

    x = jax.random.normal(k_x, (num_nodes, node_feature_dim), jnp.float32)
    edge_index = jax.random.randint(k_e, (2, num_edges), 0, num_nodes, jnp.int32)
    # batch (graph id per node) only affects num_graphs in the reference module
    # and not the forward output; kept for shape fidelity.
    batch = jnp.concatenate([jnp.zeros(num_nodes // 2, jnp.int32),
                             jnp.ones(num_nodes - num_nodes // 2, jnp.int32)])

    params = init_params(k_p, node_feature_dim, state_dim,
                         num_message_passing_rounds, output_dim)

    mean, std = simple_gnn_forward(x, edge_index, params, output_dim=output_dim)
    jax.block_until_ready((mean, std))

    mean_ref, std_ref = reference_forward(x, edge_index, params, output_dim)
    # bf16 MXU operands (adjacency / activations / weights) vs f32 reference.
    assert jnp.allclose(mean, mean_ref, atol=3e-2, rtol=3e-2)
    assert jnp.allclose(std, std_ref, atol=3e-2, rtol=3e-2)

    print("KERNEL_OK")
</pallas_src>

<mosaic_0001>
module attributes {stable_mosaic.version = 11 : i64} {
  func.func @gnn_kernel(%arg0: i32, %arg1: i32, %arg2: i32, %arg3: memref<128x128xbf16, #tpu.memory_space<vmem>>, %arg4: memref<1x1x128x128xbf16, #tpu.memory_space<vmem>>, %arg5: memref<128x128xbf16, #tpu.memory_space<vmem>>, %arg6: memref<1x128xf32, #tpu.memory_space<vmem>>, %arg7: memref<3x128x128xbf16, #tpu.memory_space<vmem>>, %arg8: memref<3x1x128xf32, #tpu.memory_space<vmem>>, %arg9: memref<3x128x128xbf16, #tpu.memory_space<vmem>>, %arg10: memref<3x1x128xf32, #tpu.memory_space<vmem>>, %arg11: memref<128x128xbf16, #tpu.memory_space<vmem>>, %arg12: memref<1x128xf32, #tpu.memory_space<vmem>>, %arg13: memref<128x128xbf16, #tpu.memory_space<vmem>>, %arg14: memref<1x128xf32, #tpu.memory_space<vmem>>, %arg15: memref<128x128xf32, #tpu.memory_space<vmem>>, %arg16: memref<128x128xf32, #tpu.memory_space<vmem>>, %arg17: memref<2x128x128xbf16, #tpu.memory_space<vmem>>, %arg18: memref<128x128xf32, #tpu.memory_space<vmem>>) attributes {dimension_semantics = [#tpu.dimension_semantics<arbitrary>, #tpu.dimension_semantics<arbitrary>, #tpu.dimension_semantics<arbitrary>], iteration_bounds = array<i64: 3, 1, 1>, scalar_prefetch = 0 : i64, scratch_operands = 3 : i64, tpu.core_type = #tpu.core_type<tc>, window_params = [{pipeline_mode = #tpu.pipeline_mode<synchronous>, transform_indices = @transform_0, window_bounds = array<i64: 128, 128>}, {transform_indices = @transform_1, window_bounds = array<i64: 1, 1, 128, 128>}, {pipeline_mode = #tpu.pipeline_mode<synchronous>, transform_indices = @transform_2, window_bounds = array<i64: 128, 128>}, {pipeline_mode = #tpu.pipeline_mode<synchronous>, transform_indices = @transform_3, window_bounds = array<i64: 1, 128>}, {pipeline_mode = #tpu.pipeline_mode<synchronous>, transform_indices = @transform_4, window_bounds = array<i64: 3, 128, 128>}, {pipeline_mode = #tpu.pipeline_mode<synchronous>, transform_indices = @transform_5, window_bounds = array<i64: 3, 1, 128>}, {pipeline_mode = #tpu.pipeline_mode<synchronous>, transform_indices = @transform_6, window_bounds = array<i64: 3, 128, 128>}, {pipeline_mode = #tpu.pipeline_mode<synchronous>, transform_indices = @transform_7, window_bounds = array<i64: 3, 1, 128>}, {pipeline_mode = #tpu.pipeline_mode<synchronous>, transform_indices = @transform_8, window_bounds = array<i64: 128, 128>}, {pipeline_mode = #tpu.pipeline_mode<synchronous>, transform_indices = @transform_9, window_bounds = array<i64: 1, 128>}, {pipeline_mode = #tpu.pipeline_mode<synchronous>, transform_indices = @transform_10, window_bounds = array<i64: 128, 128>}, {pipeline_mode = #tpu.pipeline_mode<synchronous>, transform_indices = @transform_11, window_bounds = array<i64: 1, 128>}, {transform_indices = @transform_12, window_bounds = array<i64: 128, 128>}]} {
    %c0_i32 = arith.constant 0 : i32
    %0 = arith.cmpi eq, %arg0, %c0_i32 : i32
    %c0_i32_0 = arith.constant 0 : i32
    %1 = arith.cmpi eq, %arg1, %c0_i32_0 : i32
    %2 = arith.andi %0, %1 : i1
    %c0_i32_1 = arith.constant 0 : i32
    %3 = arith.cmpi eq, %arg2, %c0_i32_1 : i32
    %4 = arith.andi %2, %3 : i1
    %5 = arith.extui %4 : i1 to i32
    %c0_i32_2 = arith.constant 0 : i32
    %6 = arith.cmpi ne, %5, %c0_i32_2 : i32
    scf.if %6 {
      %c0_21 = arith.constant 0 : index
      %c0_22 = arith.constant 0 : index
      %34 = vector.load %arg5[%c0_21, %c0_22] : memref<128x128xbf16, #tpu.memory_space<vmem>>, vector<128x128xbf16>
      %c0_23 = arith.constant 0 : index
      %c0_24 = arith.constant 0 : index
      %35 = vector.load %arg6[%c0_23, %c0_24] : memref<1x128xf32, #tpu.memory_space<vmem>>, vector<1x128xf32>
      %c0_25 = arith.constant 0 : index
      %c0_26 = arith.constant 0 : index
      %c0_27 = arith.constant 0 : index
      %36 = vector.load %arg7[%c0_25, %c0_26, %c0_27] : memref<3x128x128xbf16, #tpu.memory_space<vmem>>, vector<1x128x128xbf16>
      %37 = vector.shape_cast %36 : vector<1x128x128xbf16> to vector<128x128xbf16>
      %c0_28 = arith.constant 0 : index
      %c0_29 = arith.constant 0 : index
      %c0_30 = arith.constant 0 : index
      %38 = vector.load %arg8[%c0_28, %c0_29, %c0_30] : memref<3x1x128xf32, #tpu.memory_space<vmem>>, vector<1x1x128xf32>
      %39 = vector.shape_cast %38 : vector<1x1x128xf32> to vector<1x128xf32>
      %c0_i32_31 = arith.constant 0 : i32
      %c1_i32_32 = arith.constant 1 : i32
      %40 = arith.muli %c0_i32_31, %c1_i32_32 : i32
      %c0_i32_33 = arith.constant 0 : i32
      %41 = arith.addi %c0_i32_33, %40 : i32
      %c128_i32 = arith.constant 128 : i32
      %42 = arith.muli %41, %c128_i32 : i32
      %43 = tpu.assume_multiple %42, 128 : i32
      %44 = arith.index_cast %43 : i32 to index
      %c0_34 = arith.constant 0 : index
      %45 = vector.load %arg3[%44, %c0_34] : memref<128x128xbf16, #tpu.memory_space<vmem>>, vector<128x128xbf16>
      %cst_35 = arith.constant dense<0.000000e+00> : vector<128x128xf32>
      %46 = tpu.matmul %45, %34, %cst_35 {dimension_numbers = #tpu.dot_dimension_numbers<[1], [0], [0], [1], [0, 0, 1, 1], [], []>} : vector<128x128xbf16>, vector<128x128xbf16>, vector<128x128xf32> -> vector<128x128xf32>
      %47 = vector.broadcast %35 : vector<1x128xf32> to vector<128x128xf32>
      %48 = arith.addf %46, %47 : vector<128x128xf32>
      %cst_36 = arith.constant 0.000000e+00 : f32
      %49 = vector.broadcast %cst_36 : f32 to vector<128x128xf32>
      %50 = arith.maximumf %48, %49 : vector<128x128xf32>
      %51 = arith.index_cast %43 : i32 to index
      %c0_37 = arith.constant 0 : index
      %52 = vector.load %arg16[%51, %c0_37] : memref<128x128xf32, #tpu.memory_space<vmem>>, vector<128x128xf32>
      tpu.vector_store %arg16[%51, %c0_37], %50 {strides = array<i32>} : memref<128x128xf32, #tpu.memory_space<vmem>>, vector<128x128xf32>,
      %53 = arith.truncf %50 : vector<128x128xf32> to vector<128x128xbf16>
      %cst_38 = arith.constant dense<0.000000e+00> : vector<128x128xf32>
      %54 = tpu.matmul %53, %37, %cst_38 {dimension_numbers = #tpu.dot_dimension_numbers<[1], [0], [0], [1], [0, 0, 1, 1], [], []>} : vector<128x128xbf16>, vector<128x128xbf16>, vector<128x128xf32> -> vector<128x128xf32>
      %55 = vector.broadcast %39 : vector<1x128xf32> to vector<128x128xf32>
      %56 = arith.addf %54, %55 : vector<128x128xf32>
      %cst_39 = arith.constant 0.000000e+00 : f32
      %57 = vector.broadcast %cst_39 : f32 to vector<128x128xf32>
      %58 = arith.maximumf %56, %57 : vector<128x128xf32>
      %59 = arith.truncf %58 : vector<128x128xf32> to vector<128x128xbf16>
      %60 = arith.index_cast %41 : i32 to index
      %c0_40 = arith.constant 0 : index
      %c0_41 = arith.constant 0 : index
      %61 = vector.load %arg17[%60, %c0_40, %c0_41] : memref<2x128x128xbf16, #tpu.memory_space<vmem>>, vector<1x128x128xbf16>
      %62 = vector.shape_cast %61 : vector<1x128x128xbf16> to vector<128x128xbf16>
      %63 = vector.shape_cast %59 : vector<128x128xbf16> to vector<1x128x128xbf16>
      tpu.vector_store %arg17[%60, %c0_40, %c0_41], %63 {strides = array<i32>} : memref<2x128x128xbf16, #tpu.memory_space<vmem>>, vector<1x128x128xbf16>,
      %c1_i32_42 = arith.constant 1 : i32
    } else {
    }
    %c0_i32_3 = arith.constant 0 : i32
    %7 = arith.cmpi eq, %arg2, %c0_i32_3 : i32
    %8 = arith.extui %7 : i1 to i32
    %c0_i32_4 = arith.constant 0 : i32
    %9 = arith.cmpi ne, %8, %c0_i32_4 : i32
    scf.if %9 {
      %cst_21 = arith.constant 0.000000e+00 : f32
      %34 = vector.broadcast %cst_21 : f32 to vector<128x128xf32>
      %c0_22 = arith.constant 0 : index
      %c0_23 = arith.constant 0 : index
      %35 = vector.load %arg18[%c0_22, %c0_23] : memref<128x128xf32, #tpu.memory_space<vmem>>, vector<128x128xf32>
      tpu.vector_store %arg18[%c0_22, %c0_23], %34 {strides = array<i32>} : memref<128x128xf32, #tpu.memory_space<vmem>>, vector<128x128xf32>,
    } else {
    }
    %c0 = arith.constant 0 : index
    %c0_5 = arith.constant 0 : index
    %10 = vector.load %arg18[%c0, %c0_5] : memref<128x128xf32, #tpu.memory_space<vmem>>, vector<128x128xf32>
    %c0_6 = arith.constant 0 : index
    %c0_7 = arith.constant 0 : index
    %c0_8 = arith.constant 0 : index
    %c0_9 = arith.constant 0 : index
    %11 = vector.load %arg4[%c0_6, %c0_7, %c0_8, %c0_9] : memref<1x1x128x128xbf16, #tpu.memory_space<vmem>>, vector<1x1x128x128xbf16>
    %12 = vector.shape_cast %11 : vector<1x1x128x128xbf16> to vector<128x128xbf16>
    %c2_i32 = arith.constant 2 : i32
    %c0_i32_10 = arith.constant 0 : i32
    %13 = arith.cmpi eq, %c2_i32, %c0_i32_10 : i32
    %c1_i32 = arith.constant 1 : i32
    %14 = arith.select %13, %c1_i32, %c2_i32 : i32
    %15 = arith.remsi %arg0, %14 : i32
    %c0_i32_11 = arith.constant 0 : i32
    %16 = arith.cmpi ne, %15, %c0_i32_11 : i32
    %c0_i32_12 = arith.constant 0 : i32
    %17 = arith.cmpi slt, %15, %c0_i32_12 : i32
    %c0_i32_13 = arith.constant 0 : i32
    %18 = arith.cmpi slt, %14, %c0_i32_13 : i32
    %19 = arith.xori %17, %18 : i1
    %20 = arith.andi %19, %16 : i1
    %21 = arith.addi %15, %14 : i32
    %22 = arith.select %20, %21, %15 : i32
    %c1_i32_14 = arith.constant 1 : i32
    %23 = arith.muli %22, %c1_i32_14 : i32
    %24 = arith.addi %23, %arg2 : i32
    %25 = arith.index_cast %24 : i32 to index
    %c0_15 = arith.constant 0 : index
    %c0_16 = arith.constant 0 : index
    %26 = vector.load %arg17[%25, %c0_15, %c0_16] : memref<2x128x128xbf16, #tpu.memory_space<vmem>>, vector<1x128x128xbf16>
    %27 = vector.shape_cast %26 : vector<1x128x128xbf16> to vector<128x128xbf16>
    %cst = arith.constant dense<0.000000e+00> : vector<128x128xf32>
    %28 = tpu.matmul %12, %27, %cst {dimension_numbers = #tpu.dot_dimension_numbers<[1], [0], [0], [1], [0, 0, 1, 1], [], []>} : vector<128x128xbf16>, vector<128x128xbf16>, vector<128x128xf32> -> vector<128x128xf32>
    %29 = arith.addf %10, %28 : vector<128x128xf32>
    %c0_17 = arith.constant 0 : index
    %c0_18 = arith.constant 0 : index
    %30 = vector.load %arg18[%c0_17, %c0_18] : memref<128x128xf32, #tpu.memory_space<vmem>>, vector<128x128xf32>
    tpu.vector_store %arg18[%c0_17, %c0_18], %29 {strides = array<i32>} : memref<128x128xf32, #tpu.memory_space<vmem>>, vector<128x128xf32>,
    %c0_i32_19 = arith.constant 0 : i32
    %31 = arith.cmpi eq, %arg2, %c0_i32_19 : i32
    %32 = arith.extui %31 : i1 to i32
    %c0_i32_20 = arith.constant 0 : i32
    %33 = arith.cmpi ne, %32, %c0_i32_20 : i32
    scf.if %33 {
      %c128_i32 = arith.constant 128 : i32
      %34 = arith.muli %arg1, %c128_i32 : i32
      %35 = tpu.assume_multiple %34, 128 : i32
      %c0_21 = arith.constant 0 : index
      %c0_22 = arith.constant 0 : index
      %36 = vector.load %arg18[%c0_21, %c0_22] : memref<128x128xf32, #tpu.memory_space<vmem>>, vector<128x128xf32>
      %37 = arith.truncf %36 : vector<128x128xf32> to vector<128x128xbf16>
      %38 = arith.index_cast %arg0 : i32 to index
      %c0_23 = arith.constant 0 : index
      %c0_24 = arith.constant 0 : index
      %39 = vector.load %arg9[%38, %c0_23, %c0_24] : memref<3x128x128xbf16, #tpu.memory_space<vmem>>, vector<1x128x128xbf16>
      %40 = vector.shape_cast %39 : vector<1x128x128xbf16> to vector<128x128xbf16>
      %cst_25 = arith.constant dense<0.000000e+00> : vector<128x128xf32>
      %41 = tpu.matmul %37, %40, %cst_25 {dimension_numbers = #tpu.dot_dimension_numbers<[1], [0], [0], [1], [0, 0, 1, 1], [], []>} : vector<128x128xbf16>, vector<128x128xbf16>, vector<128x128xf32> -> vector<128x128xf32>
      %42 = arith.index_cast %arg0 : i32 to index
      %c0_26 = arith.constant 0 : index
      %c0_27 = arith.constant 0 : index
      %43 = vector.load %arg10[%42, %c0_26, %c0_27] : memref<3x1x128xf32, #tpu.memory_space<vmem>>, vector<1x1x128xf32>
      %44 = vector.shape_cast %43 : vector<1x1x128xf32> to vector<1x128xf32>
      %45 = vector.broadcast %44 : vector<1x128xf32> to vector<128x128xf32>
      %46 = arith.addf %41, %45 : vector<128x128xf32>
      %cst_28 = arith.constant 0.000000e+00 : f32
      %47 = vector.broadcast %cst_28 : f32 to vector<128x128xf32>
      %48 = arith.maximumf %46, %47 : vector<128x128xf32>
      %49 = arith.index_cast %35 : i32 to index
      %c0_29 = arith.constant 0 : index
      %50 = vector.load %arg16[%49, %c0_29] : memref<128x128xf32, #tpu.memory_space<vmem>>, vector<128x128xf32>
      %51 = arith.addf %50, %48 : vector<128x128xf32>
      %52 = arith.index_cast %35 : i32 to index
      %c0_30 = arith.constant 0 : index
      %53 = vector.load %arg16[%52, %c0_30] : memref<128x128xf32, #tpu.memory_space<vmem>>, vector<128x128xf32>
      tpu.vector_store %arg16[%52, %c0_30], %51 {strides = array<i32>} : memref<128x128xf32, #tpu.memory_space<vmem>>, vector<128x128xf32>,
      %c2_i32_31 = arith.constant 2 : i32
      %54 = arith.cmpi slt, %arg0, %c2_i32_31 : i32
      %55 = arith.extui %54 : i1 to i32
      %c0_i32_32 = arith.constant 0 : i32
      %56 = arith.cmpi ne, %55, %c0_i32_32 : i32
      scf.if %56 {
        %c1_i32_35 = arith.constant 1 : i32
        %60 = arith.addi %arg0, %c1_i32_35 : i32
        %c2_i32_36 = arith.constant 2 : i32
        %61 = arith.minsi %60, %c2_i32_36 : i32
        %62 = arith.truncf %51 : vector<128x128xf32> to vector<128x128xbf16>
        %63 = arith.index_cast %61 : i32 to index
        %c0_37 = arith.constant 0 : index
        %c0_38 = arith.constant 0 : index
        %64 = vector.load %arg7[%63, %c0_37, %c0_38] : memref<3x128x128xbf16, #tpu.memory_space<vmem>>, vector<1x128x128xbf16>
        %65 = vector.shape_cast %64 : vector<1x128x128xbf16> to vector<128x128xbf16>
        %cst_39 = arith.constant dense<0.000000e+00> : vector<128x128xf32>
        %66 = tpu.matmul %62, %65, %cst_39 {dimension_numbers = #tpu.dot_dimension_numbers<[1], [0], [0], [1], [0, 0, 1, 1], [], []>} : vector<128x128xbf16>, vector<128x128xbf16>, vector<128x128xf32> -> vector<128x128xf32>
        %67 = arith.index_cast %61 : i32 to index
        %c0_40 = arith.constant 0 : index
        %c0_41 = arith.constant 0 : index
        %68 = vector.load %arg8[%67, %c0_40, %c0_41] : memref<3x1x128xf32, #tpu.memory_space<vmem>>, vector<1x1x128xf32>
        %69 = vector.shape_cast %68 : vector<1x1x128xf32> to vector<1x128xf32>
        %70 = vector.broadcast %69 : vector<1x128xf32> to vector<128x128xf32>
        %71 = arith.addf %66, %70 : vector<128x128xf32>
        %cst_42 = arith.constant 0.000000e+00 : f32
        %72 = vector.broadcast %cst_42 : f32 to vector<128x128xf32>
        %73 = arith.maximumf %71, %72 : vector<128x128xf32>
        %74 = arith.truncf %73 : vector<128x128xf32> to vector<128x128xbf16>
        %c1_i32_43 = arith.constant 1 : i32
        %75 = arith.addi %arg0, %c1_i32_43 : i32
        %c2_i32_44 = arith.constant 2 : i32
        %c0_i32_45 = arith.constant 0 : i32
        %76 = arith.cmpi eq, %c2_i32_44, %c0_i32_45 : i32
        %c1_i32_46 = arith.constant 1 : i32
        %77 = arith.select %76, %c1_i32_46, %c2_i32_44 : i32
        %78 = arith.remsi %75, %77 : i32
        %c0_i32_47 = arith.constant 0 : i32
        %79 = arith.cmpi ne, %78, %c0_i32_47 : i32
        %c0_i32_48 = arith.constant 0 : i32
        %80 = arith.cmpi slt, %78, %c0_i32_48 : i32
        %c0_i32_49 = arith.constant 0 : i32
        %81 = arith.cmpi slt, %77, %c0_i32_49 : i32
        %82 = arith.xori %80, %81 : i1
        %83 = arith.andi %82, %79 : i1
        %84 = arith.addi %78, %77 : i32
        %85 = arith.select %83, %84, %78 : i32
        %c1_i32_50 = arith.constant 1 : i32
        %86 = arith.muli %85, %c1_i32_50 : i32
        %87 = arith.addi %86, %arg1 : i32
        %88 = arith.index_cast %87 : i32 to index
        %c0_51 = arith.constant 0 : index
        %c0_52 = arith.constant 0 : index
        %89 = vector.load %arg17[%88, %c0_51, %c0_52] : memref<2x128x128xbf16, #tpu.memory_space<vmem>>, vector<1x128x128xbf16>
        %90 = vector.shape_cast %89 : vector<1x128x128xbf16> to vector<128x128xbf16>
        %91 = vector.shape_cast %74 : vector<128x128xbf16> to vector<1x128x128xbf16>
        tpu.vector_store %arg17[%88, %c0_51, %c0_52], %91 {strides = array<i32>} : memref<2x128x128xbf16, #tpu.memory_space<vmem>>, vector<1x128x128xbf16>,
      } else {
      }
      %c2_i32_33 = arith.constant 2 : i32
      %57 = arith.cmpi eq, %arg0, %c2_i32_33 : i32
      %58 = arith.extui %57 : i1 to i32
      %c0_i32_34 = arith.constant 0 : i32
      %59 = arith.cmpi ne, %58, %c0_i32_34 : i32
      scf.if %59 {
        %60 = arith.truncf %51 : vector<128x128xf32> to vector<128x128xbf16>
        %c0_35 = arith.constant 0 : index
        %c0_36 = arith.constant 0 : index
        %61 = vector.load %arg11[%c0_35, %c0_36] : memref<128x128xbf16, #tpu.memory_space<vmem>>, vector<128x128xbf16>
        %cst_37 = arith.constant dense<0.000000e+00> : vector<128x128xf32>
        %62 = tpu.matmul %60, %61, %cst_37 {dimension_numbers = #tpu.dot_dimension_numbers<[1], [0], [0], [1], [0, 0, 1, 1], [], []>} : vector<128x128xbf16>, vector<128x128xbf16>, vector<128x128xf32> -> vector<128x128xf32>
        %c0_38 = arith.constant 0 : index
        %c0_39 = arith.constant 0 : index
        %63 = vector.load %arg12[%c0_38, %c0_39] : memref<1x128xf32, #tpu.memory_space<vmem>>, vector<1x128xf32>
        %64 = vector.broadcast %63 : vector<1x128xf32> to vector<128x128xf32>
        %65 = arith.addf %62, %64 : vector<128x128xf32>
        %cst_40 = arith.constant 0.000000e+00 : f32
        %66 = vector.broadcast %cst_40 : f32 to vector<128x128xf32>
        %67 = arith.maximumf %65, %66 : vector<128x128xf32>
        %68 = arith.truncf %67 : vector<128x128xf32> to vector<128x128xbf16>
        %c0_41 = arith.constant 0 : index
        %c0_42 = arith.constant 0 : index
        %69 = vector.load %arg13[%c0_41, %c0_42] : memref<128x128xbf16, #tpu.memory_space<vmem>>, vector<128x128xbf16>
        %cst_43 = arith.constant dense<0.000000e+00> : vector<128x128xf32>
        %70 = tpu.matmul %68, %69, %cst_43 {dimension_numbers = #tpu.dot_dimension_numbers<[1], [0], [0], [1], [0, 0, 1, 1], [], []>} : vector<128x128xbf16>, vector<128x128xbf16>, vector<128x128xf32> -> vector<128x128xf32>
        %c0_44 = arith.constant 0 : index
        %c0_45 = arith.constant 0 : index
        %71 = vector.load %arg14[%c0_44, %c0_45] : memref<1x128xf32, #tpu.memory_space<vmem>>, vector<1x128xf32>
        %72 = vector.broadcast %71 : vector<1x128xf32> to vector<128x128xf32>
        %73 = arith.addf %70, %72 : vector<128x128xf32>
        %74 = tpu.iota {dimensions = array<i32: 1>} : vector<128x128xi32>
        %c1_i32_46 = arith.constant 1 : i32
        %75 = vector.broadcast %c1_i32_46 : i32 to vector<128x128xi32>
        %76 = arith.cmpi sge, %74, %75 : vector<128x128xi32>
        %77 = math.exp %73 : vector<128x128xf32>
        %78 = arith.select %76, %77, %73 : vector<128x128xi1>, vector<128x128xf32>
        %c0_47 = arith.constant 0 : index
        %c0_48 = arith.constant 0 : index
        %79 = vector.load %arg15[%c0_47, %c0_48] : memref<128x128xf32, #tpu.memory_space<vmem>>, vector<128x128xf32>
        tpu.vector_store %arg15[%c0_47, %c0_48], %78 {strides = array<i32>} : memref<128x128xf32, #tpu.memory_space<vmem>>, vector<128x128xf32>,
      } else {
      }
    } else {
    }
    return
  }
  func.func @transform_0(%arg0: i32, %arg1: i32, %arg2: i32) -> (i32, i32) {
    %c0_i32 = arith.constant 0 : i32
    %c0_i32_0 = arith.constant 0 : i32
    %c0_i32_1 = arith.constant 0 : i32
    return %c0_i32, %c0_i32_0 : i32, i32
  }
  func.func @transform_1(%arg0: i32, %arg1: i32, %arg2: i32) -> (i32, i32, i32, i32) {
    %c0_i32 = arith.constant 0 : i32
    %c0_i32_0 = arith.constant 0 : i32
    %c0_i32_1 = arith.constant 0 : i32
    return %arg1, %arg2, %c0_i32, %c0_i32_0 : i32, i32, i32, i32
  }
  func.func @transform_2(%arg0: i32, %arg1: i32, %arg2: i32) -> (i32, i32) {
    %c0_i32 = arith.constant 0 : i32
    %c0_i32_0 = arith.constant 0 : i32
    %c0_i32_1 = arith.constant 0 : i32
    return %c0_i32, %c0_i32_0 : i32, i32
  }
  func.func @transform_3(%arg0: i32, %arg1: i32, %arg2: i32) -> (i32, i32) {
    %c0_i32 = arith.constant 0 : i32
    %c0_i32_0 = arith.constant 0 : i32
    %c0_i32_1 = arith.constant 0 : i32
    return %c0_i32, %c0_i32_0 : i32, i32
  }
  func.func @transform_4(%arg0: i32, %arg1: i32, %arg2: i32) -> (i32, i32, i32) {
    %c0_i32 = arith.constant 0 : i32
    %c0_i32_0 = arith.constant 0 : i32
    %c0_i32_1 = arith.constant 0 : i32
    %c0_i32_2 = arith.constant 0 : i32
    return %c0_i32, %c0_i32_0, %c0_i32_1 : i32, i32, i32
  }
  func.func @transform_5(%arg0: i32, %arg1: i32, %arg2: i32) -> (i32, i32, i32) {
    %c0_i32 = arith.constant 0 : i32
    %c0_i32_0 = arith.constant 0 : i32
    %c0_i32_1 = arith.constant 0 : i32
    %c0_i32_2 = arith.constant 0 : i32
    return %c0_i32, %c0_i32_0, %c0_i32_1 : i32, i32, i32
  }
  func.func @transform_6(%arg0: i32, %arg1: i32, %arg2: i32) -> (i32, i32, i32) {
    %c0_i32 = arith.constant 0 : i32
    %c0_i32_0 = arith.constant 0 : i32
    %c0_i32_1 = arith.constant 0 : i32
    %c0_i32_2 = arith.constant 0 : i32
    return %c0_i32, %c0_i32_0, %c0_i32_1 : i32, i32, i32
  }
  func.func @transform_7(%arg0: i32, %arg1: i32, %arg2: i32) -> (i32, i32, i32) {
    %c0_i32 = arith.constant 0 : i32
    %c0_i32_0 = arith.constant 0 : i32
    %c0_i32_1 = arith.constant 0 : i32
    %c0_i32_2 = arith.constant 0 : i32
    return %c0_i32, %c0_i32_0, %c0_i32_1 : i32, i32, i32
  }
  func.func @transform_8(%arg0: i32, %arg1: i32, %arg2: i32) -> (i32, i32) {
    %c0_i32 = arith.constant 0 : i32
    %c0_i32_0 = arith.constant 0 : i32
    %c0_i32_1 = arith.constant 0 : i32
    return %c0_i32, %c0_i32_0 : i32, i32
  }
  func.func @transform_9(%arg0: i32, %arg1: i32, %arg2: i32) -> (i32, i32) {
    %c0_i32 = arith.constant 0 : i32
    %c0_i32_0 = arith.constant 0 : i32
    %c0_i32_1 = arith.constant 0 : i32
    return %c0_i32, %c0_i32_0 : i32, i32
  }
  func.func @transform_10(%arg0: i32, %arg1: i32, %arg2: i32) -> (i32, i32) {
    %c0_i32 = arith.constant 0 : i32
    %c0_i32_0 = arith.constant 0 : i32
    %c0_i32_1 = arith.constant 0 : i32
    return %c0_i32, %c0_i32_0 : i32, i32
  }
  func.func @transform_11(%arg0: i32, %arg1: i32, %arg2: i32) -> (i32, i32) {
    %c0_i32 = arith.constant 0 : i32
    %c0_i32_0 = arith.constant 0 : i32
    %c0_i32_1 = arith.constant 0 : i32
    return %c0_i32, %c0_i32_0 : i32, i32
  }
  func.func @transform_12(%arg0: i32, %arg1: i32, %arg2: i32) -> (i32, i32) {
    %c2_i32 = arith.constant 2 : i32
    %0 = arith.cmpi eq, %arg0, %c2_i32 : i32
    %c0_i32 = arith.constant 0 : i32
    %1 = arith.select %0, %arg1, %c0_i32 : i32
    %c0_i32_0 = arith.constant 0 : i32
    %c0_i32_1 = arith.constant 0 : i32
    return %1, %c0_i32_0 : i32, i32
  }
}

</mosaic_0001>

<llo_original>
// kernel: simple_gnn_forward.1
$region0: #{simple_gnn_forward.1}
  #allocation0 [shape = 'u32[]', space=smem, size = 0x4, offset = 0x4, fixed_abs, tag = 'smem constant byte address 0x4 - core index']
  #allocation1 [shape = 'u32[144,128]{1,0:T(1,128)}', space=vmem, size = 0x12000, scoped, tag = 'internal scratch']
  #allocation2 [shape = 'f32[128,128]{1,0:T(8,128)}', space=vmem, size = 0x10000, scoped, tag = 'scratch operand']
  #allocation3 [shape = 'bf16[2,128,128]{2,1,0:T(8,128)(2,1)}', space=vmem, size = 0x10000, scoped, tag = 'scratch operand']
  #allocation4 [shape = 'f32[128,128]{1,0:T(8,128)}', space=vmem, size = 0x10000, scoped, tag = 'scratch operand']
  %s0 = inlined_call_operand.vmem [shape: bf16[128,128], index: 0, kind: input, shape index: {}]
  %s1 = inlined_call_operand.vmem [shape: bf16[1,1,128,128], index: 1, kind: input, shape index: {}]
  %s2 = inlined_call_operand.vmem [shape: bf16[128,128], index: 2, kind: input, shape index: {}]
  %s3 = inlined_call_operand.vmem [shape: f32[1,128], index: 3, kind: input, shape index: {}]
  %s4 = inlined_call_operand.vmem [shape: bf16[3,128,128], index: 4, kind: input, shape index: {}]
  %s5 = inlined_call_operand.vmem [shape: f32[3,1,128], index: 5, kind: input, shape index: {}]
  %s6 = inlined_call_operand.vmem [shape: bf16[3,128,128], index: 6, kind: input, shape index: {}]
  %s7 = inlined_call_operand.vmem [shape: f32[3,1,128], index: 7, kind: input, shape index: {}]
  %s8 = inlined_call_operand.vmem [shape: bf16[128,128], index: 8, kind: input, shape index: {}]
  %s9 = inlined_call_operand.vmem [shape: f32[1,128], index: 9, kind: input, shape index: {}]
  %s10 = inlined_call_operand.vmem [shape: bf16[128,128], index: 10, kind: input, shape index: {}]
  %s11 = inlined_call_operand.vmem [shape: f32[1,128], index: 11, kind: input, shape index: {}]
  %s12 = inlined_call_operand.vmem [shape: f32[128,128], index: 12, kind: output, shape index: {}]
  %s13 = sld [smem:[#allocation0]]
  $region101: #{simple_gnn_forward.1} parent=0
    _
  %s15 = ssub.s32 1, %s13
  %s16 = scalar_select 0, %s15, %s13
  loop: start=0, step=1, limit=5
  $region2: #{simple_gnn_forward.1} parent=0 // loop_pre_header
    _
  $region3: #{simple_gnn_forward.1} parent=0 // loop_header
    %s18 = sphi 0, %s22
    %p19 = scmp.ge.s32.totalorder %s18, 5
    %s25 = sphi 0, %s44
    %s26 = sphi 0, %s40
    %s27 = sphi 0, %s36
    %s28 = sphi 0, %s25
    %s29 = sphi 0, %s26
    %s30 = sphi 0, %s27
    %s31 = sphi 0, %s28
    %s32 = sphi 0, %s29
    %s33 = sphi 0, %s30
    %s45 = sphi 0, %s45
    %s47 = sphi 0, %s45
    %s48 = sphi 0, %s47
    %s62 = sphi 0, %s48
    %s70 = sphi 0, %s72
    %s73 = sphi 0, %s70
    %s74 = sphi 0, %s73
    %s90 = sphi 0, %s74
    %s94 = sphi 0, %s94
    %s96 = sphi 0, %s94
    %s97 = sphi 0, %s96
    %s111 = sphi 0, %s97
    %s115 = sphi 0, %s115
    %s117 = sphi 0, %s115
    %s118 = sphi 0, %s117
    %s132 = sphi 0, %s118
    %s136 = sphi 0, %s136
    %s138 = sphi 0, %s136
    %s139 = sphi 0, %s138
    %s153 = sphi 0, %s139
    %s157 = sphi 0, %s157
    %s159 = sphi 0, %s157
    %s160 = sphi 0, %s159
    %s174 = sphi 0, %s160
    %s178 = sphi 0, %s178
    %s180 = sphi 0, %s178
    %s181 = sphi 0, %s180
    %s195 = sphi 0, %s181
    %s199 = sphi 0, %s199
    %s201 = sphi 0, %s199
    %s202 = sphi 0, %s201
    %s216 = sphi 0, %s202
    %s220 = sphi 0, %s220
    %s222 = sphi 0, %s220
    %s223 = sphi 0, %s222
    %s237 = sphi 0, %s223
    %s241 = sphi 0, %s241
    %s243 = sphi 0, %s241
    %s244 = sphi 0, %s243
    %s258 = sphi 0, %s244
    %s262 = sphi 0, %s262
    %s264 = sphi 0, %s262
    %s265 = sphi 0, %s264
    %s279 = sphi 0, %s265
    %s283 = sphi 0, %s283
    %s285 = sphi 0, %s283
    %s286 = sphi 0, %s285
    %s300 = sphi 0, %s286
    %s310 = sphi 0, %s312
    %s313 = sphi 0, %s310
    %s314 = sphi 0, %s313
    %s330 = sphi 0, %s314
  $region4: #{simple_gnn_forward.1} parent=0 // loop_header_branch
    %21 = sbr.rel (%p19) target = $region8
  $region5: #{simple_gnn_forward.1} parent=0 // loop_body
    %s23 = ssub.s32 %s18, 1
    %s24 = ssub.s32 %s18, 2
    %s34 = sadd.s32 1, %s27
    %p35 = scmp.ge.s32.totalorder %s34, 1
    %s36 = scalar_select %p35, 0, %s34
    %s37 = sadd.s32 1, %s26
    %s38 = scalar_select %p35, %s37, %s26
    %p39 = scmp.ge.s32.totalorder %s38, 1
    %s40 = scalar_select %p39, 0, %s38
    %s41 = sadd.s32 1, %s25
    %s42 = scalar_select %p39, %s41, %s25
    %p43 = scmp.ge.s32.totalorder %s42, 3
    %s44 = scalar_select %p43, 0, %s42
    %s46 = sadd.s32 %s45, 1
    %p49 = scmp.eq.s32.totalorder %s18, 2
    %p50 = scmp.ne.s32.totalorder %s45, %s47
    %p51 = scmp.eq.s32.totalorder %s18, 0
    %p52 = por %p50, %p51
    %p53 = scmp.ne.s32.totalorder %s45, %s47
    %p54 = scmp.eq.s32.totalorder %s23, 2
    %p55 = por %p53, %p54
    %p56 = scmp.ne.s32.totalorder %s47, %s48
    %p57 = scmp.eq.s32.totalorder %s23, 0
    %p58 = por %p56, %p57
    %p59 = scmp.ne.s32.totalorder %s47, %s48
    %p60 = scmp.eq.s32.totalorder %s24, 2
    %p61 = por %p59, %p60
    %p63 = scmp.ne.s32.totalorder %s48, %s62
    %p64 = scmp.eq.s32.totalorder %s24, 0
    %p65 = por %p63, %p64
    %s66 = ssub.s32 %s26, %s40
    %s67 = ssub.s32 %s27, %s36
    %s68 = sor.u32 %s66, %s67
    %p69 = scmp.eq.s32.totalorder %s68, 0
    %s71 = sadd.s32 %s70, 1
    %s72 = scalar_select %p69, %s70, %s71
    %p75 = pneg %p69
    %p76 = scmp.eq.s32.totalorder %s18, 2
    %p77 = por %p75, %p76
    %p78 = scmp.ne.s32.totalorder %s70, %s73
    %p79 = scmp.eq.s32.totalorder %s18, 0
    %p80 = por %p78, %p79
    %p81 = scmp.ne.s32.totalorder %s70, %s73
    %p82 = scmp.eq.s32.totalorder %s23, 2
    %p83 = por %p81, %p82
    %p84 = scmp.ne.s32.totalorder %s73, %s74
    %p85 = scmp.eq.s32.totalorder %s23, 0
    %p86 = por %p84, %p85
    %p87 = scmp.ne.s32.totalorder %s73, %s74
    %p88 = scmp.eq.s32.totalorder %s24, 2
    %p89 = por %p87, %p88
    %p91 = scmp.ne.s32.totalorder %s74, %s90
    %p92 = scmp.eq.s32.totalorder %s24, 0
    %p93 = por %p91, %p92
    %s95 = sadd.s32 %s94, 1
    %p98 = scmp.eq.s32.totalorder %s18, 2
    %p99 = scmp.ne.s32.totalorder %s94, %s96
    %p100 = scmp.eq.s32.totalorder %s18, 0
    %p101 = por %p99, %p100
    %p102 = scmp.ne.s32.totalorder %s94, %s96
    %p103 = scmp.eq.s32.totalorder %s23, 2
    %p104 = por %p102, %p103
    %p105 = scmp.ne.s32.totalorder %s96, %s97
    %p106 = scmp.eq.s32.totalorder %s23, 0
    %p107 = por %p105, %p106
    %p108 = scmp.ne.s32.totalorder %s96, %s97
    %p109 = scmp.eq.s32.totalorder %s24, 2
    %p110 = por %p108, %p109
    %p112 = scmp.ne.s32.totalorder %s97, %s111
    %p113 = scmp.eq.s32.totalorder %s24, 0
    %p114 = por %p112, %p113
    %s116 = sadd.s32 %s115, 1
    %p119 = scmp.eq.s32.totalorder %s18, 2
    %p120 = scmp.ne.s32.totalorder %s115, %s117
    %p121 = scmp.eq.s32.totalorder %s18, 0
    %p122 = por %p120, %p121
    %p123 = scmp.ne.s32.totalorder %s115, %s117
    %p124 = scmp.eq.s32.totalorder %s23, 2
    %p125 = por %p123, %p124
    %p126 = scmp.ne.s32.totalorder %s117, %s118
    %p127 = scmp.eq.s32.totalorder %s23, 0
    %p128 = por %p126, %p127
    %p129 = scmp.ne.s32.totalorder %s117, %s118
    %p130 = scmp.eq.s32.totalorder %s24, 2
    %p131 = por %p129, %p130
    %p133 = scmp.ne.s32.totalorder %s118, %s132
    %p134 = scmp.eq.s32.totalorder %s24, 0
    %p135 = por %p133, %p134
    %s137 = sadd.s32 %s136, 1
    %p140 = scmp.eq.s32.totalorder %s18, 2
    %p141 = scmp.ne.s32.totalorder %s136, %s138
    %p142 = scmp.eq.s32.totalorder %s18, 0
    %p143 = por %p141, %p142
    %p144 = scmp.ne.s32.totalorder %s136, %s138
    %p145 = scmp.eq.s32.totalorder %s23, 2
    %p146 = por %p144, %p145
    %p147 = scmp.ne.s32.totalorder %s138, %s139
    %p148 = scmp.eq.s32.totalorder %s23, 0
    %p149 = por %p147, %p148
    %p150 = scmp.ne.s32.totalorder %s138, %s139
    %p151 = scmp.eq.s32.totalorder %s24, 2
    %p152 = por %p150, %p151
    %p154 = scmp.ne.s32.totalorder %s139, %s153
    %p155 = scmp.eq.s32.totalorder %s24, 0
    %p156 = por %p154, %p155
    %s158 = sadd.s32 %s157, 1
    %p161 = scmp.eq.s32.totalorder %s18, 2
    %p162 = scmp.ne.s32.totalorder %s157, %s159
    %p163 = scmp.eq.s32.totalorder %s18, 0
    %p164 = por %p162, %p163
    %p165 = scmp.ne.s32.totalorder %s157, %s159
    %p166 = scmp.eq.s32.totalorder %s23, 2
    %p167 = por %p165, %p166
    %p168 = scmp.ne.s32.totalorder %s159, %s160
    %p169 = scmp.eq.s32.totalorder %s23, 0
    %p170 = por %p168, %p169
    %p171 = scmp.ne.s32.totalorder %s159, %s160
    %p172 = scmp.eq.s32.totalorder %s24, 2
    %p173 = por %p171, %p172
    %p175 = scmp.ne.s32.totalorder %s160, %s174
    %p176 = scmp.eq.s32.totalorder %s24, 0
    %p177 = por %p175, %p176
    %s179 = sadd.s32 %s178, 1
    %p182 = scmp.eq.s32.totalorder %s18, 2
    %p183 = scmp.ne.s32.totalorder %s178, %s180
    %p184 = scmp.eq.s32.totalorder %s18, 0
    %p185 = por %p183, %p184
    %p186 = scmp.ne.s32.totalorder %s178, %s180
    %p187 = scmp.eq.s32.totalorder %s23, 2
    %p188 = por %p186, %p187
    %p189 = scmp.ne.s32.totalorder %s180, %s181
    %p190 = scmp.eq.s32.totalorder %s23, 0
    %p191 = por %p189, %p190
    %p192 = scmp.ne.s32.totalorder %s180, %s181
    %p193 = scmp.eq.s32.totalorder %s24, 2
    %p194 = por %p192, %p193
    %p196 = scmp.ne.s32.totalorder %s181, %s195
    %p197 = scmp.eq.s32.totalorder %s24, 0
    %p198 = por %p196, %p197
    %s200 = sadd.s32 %s199, 1
    %p203 = scmp.eq.s32.totalorder %s18, 2
    %p204 = scmp.ne.s32.totalorder %s199, %s201
    %p205 = scmp.eq.s32.totalorder %s18, 0
    %p206 = por %p204, %p205
    %p207 = scmp.ne.s32.totalorder %s199, %s201
    %p208 = scmp.eq.s32.totalorder %s23, 2
    %p209 = por %p207, %p208
    %p210 = scmp.ne.s32.totalorder %s201, %s202
    %p211 = scmp.eq.s32.totalorder %s23, 0
    %p212 = por %p210, %p211
    %p213 = scmp.ne.s32.totalorder %s201, %s202
    %p214 = scmp.eq.s32.totalorder %s24, 2
    %p215 = por %p213, %p214
    %p217 = scmp.ne.s32.totalorder %s202, %s216
    %p218 = scmp.eq.s32.totalorder %s24, 0
    %p219 = por %p217, %p218
    %s221 = sadd.s32 %s220, 1
    %p224 = scmp.eq.s32.totalorder %s18, 2
    %p225 = scmp.ne.s32.totalorder %s220, %s222
    %p226 = scmp.eq.s32.totalorder %s18, 0
    %p227 = por %p225, %p226
    %p228 = scmp.ne.s32.totalorder %s220, %s222
    %p229 = scmp.eq.s32.totalorder %s23, 2
    %p230 = por %p228, %p229
    %p231 = scmp.ne.s32.totalorder %s222, %s223
    %p232 = scmp.eq.s32.totalorder %s23, 0
    %p233 = por %p231, %p232
    %p234 = scmp.ne.s32.totalorder %s222, %s223
    %p235 = scmp.eq.s32.totalorder %s24, 2
    %p236 = por %p234, %p235
    %p238 = scmp.ne.s32.totalorder %s223, %s237
    %p239 = scmp.eq.s32.totalorder %s24, 0
    %p240 = por %p238, %p239
    %s242 = sadd.s32 %s241, 1
    %p245 = scmp.eq.s32.totalorder %s18, 2
    %p246 = scmp.ne.s32.totalorder %s241, %s243
    %p247 = scmp.eq.s32.totalorder %s18, 0
    %p248 = por %p246, %p247
    %p249 = scmp.ne.s32.totalorder %s241, %s243
    %p250 = scmp.eq.s32.totalorder %s23, 2
    %p251 = por %p249, %p250
    %p252 = scmp.ne.s32.totalorder %s243, %s244
    %p253 = scmp.eq.s32.totalorder %s23, 0
    %p254 = por %p252, %p253
    %p255 = scmp.ne.s32.totalorder %s243, %s244
    %p256 = scmp.eq.s32.totalorder %s24, 2
    %p257 = por %p255, %p256
    %p259 = scmp.ne.s32.totalorder %s244, %s258
    %p260 = scmp.eq.s32.totalorder %s24, 0
    %p261 = por %p259, %p260
    %s263 = sadd.s32 %s262, 1
    %p266 = scmp.eq.s32.totalorder %s18, 2
    %p267 = scmp.ne.s32.totalorder %s262, %s264
    %p268 = scmp.eq.s32.totalorder %s18, 0
    %p269 = por %p267, %p268
    %p270 = scmp.ne.s32.totalorder %s262, %s264
    %p271 = scmp.eq.s32.totalorder %s23, 2
    %p272 = por %p270, %p271
    %p273 = scmp.ne.s32.totalorder %s264, %s265
    %p274 = scmp.eq.s32.totalorder %s23, 0
    %p275 = por %p273, %p274
    %p276 = scmp.ne.s32.totalorder %s264, %s265
    %p277 = scmp.eq.s32.totalorder %s24, 2
    %p278 = por %p276, %p277
    %p280 = scmp.ne.s32.totalorder %s265, %s279
    %p281 = scmp.eq.s32.totalorder %s24, 0
    %p282 = por %p280, %p281
    %s284 = sadd.s32 %s283, 1
    %p287 = scmp.eq.s32.totalorder %s18, 2
    %p288 = scmp.ne.s32.totalorder %s283, %s285
    %p289 = scmp.eq.s32.totalorder %s18, 0
    %p290 = por %p288, %p289
    %p291 = scmp.ne.s32.totalorder %s283, %s285
    %p292 = scmp.eq.s32.totalorder %s23, 2
    %p293 = por %p291, %p292
    %p294 = scmp.ne.s32.totalorder %s285, %s286
    %p295 = scmp.eq.s32.totalorder %s23, 0
    %p296 = por %p294, %p295
    %p297 = scmp.ne.s32.totalorder %s285, %s286
    %p298 = scmp.eq.s32.totalorder %s24, 2
    %p299 = por %p297, %p298
    %p301 = scmp.ne.s32.totalorder %s286, %s300
    %p302 = scmp.eq.s32.totalorder %s24, 0
    %p303 = por %p301, %p302
    %p304 = scmp.eq.s32.totalorder %s25, 2
    %s305 = scalar_select %p304, %s26, 0
    %p306 = scmp.eq.s32.totalorder %s44, 2
    %s307 = scalar_select %p306, %s40, 0
    %s308 = ssub.s32 %s305, %s307
    %p309 = scmp.eq.s32.totalorder %s308, 0
    %s311 = sadd.s32 %s310, 1
    %s312 = scalar_select %p309, %s310, %s311
    %p315 = pneg %p309
    %p316 = scmp.eq.s32.totalorder %s18, 2
    %p317 = por %p315, %p316
    %p318 = scmp.ne.s32.totalorder %s310, %s313
    %p319 = scmp.eq.s32.totalorder %s18, 0
    %p320 = por %p318, %p319
    %p321 = scmp.ne.s32.totalorder %s310, %s313
    %p322 = scmp.eq.s32.totalorder %s23, 2
    %p323 = por %p321, %p322
    %p324 = scmp.ne.s32.totalorder %s313, %s314
    %p325 = scmp.eq.s32.totalorder %s23, 0
    %p326 = por %p324, %p325
    %p327 = scmp.ne.s32.totalorder %s313, %s314
    %p328 = scmp.eq.s32.totalorder %s24, 2
    %p329 = por %p327, %p328
    %p331 = scmp.ne.s32.totalorder %s314, %s330
    %p332 = scmp.eq.s32.totalorder %s24, 0
    %p333 = por %p331, %p332
    %p334 = scmp.le.s32.totalorder 1, %s18
    %p335 = scmp.lt.s32.totalorder %s18, 4
    %p336 = pnand %p334, %p335
    %p337 = pneg %p336
    // Predicated region
    $region9: #{simple_gnn_forward.1} parent=5 // pred_check
      _
    $region10: #{simple_gnn_forward.1} parent=5 // pred_check_branch
      %339 = sbr.rel (%p336) target = $region12
    $region11: #{simple_gnn_forward.1} parent=5 // pred_region
      %s340 = ssub.s32 %s18, 1
      // Predicated region
      $region13: #{simple_gnn_forward.1} parent=11 // pred_check
        %p341 = pneg %p58
      $region14: #{simple_gnn_forward.1} parent=11 // pred_check_branch
        %343 = sbr.rel (%p341) target = $region16
      $region15: #{simple_gnn_forward.1} parent=11 // pred_region
        _
      $region16: #{simple_gnn_forward.1} parent=11 // pred_fallthru
        _
      // Predicated region
      $region17: #{simple_gnn_forward.1} parent=11 // pred_check
        %p344 = pneg %p86
      $region18: #{simple_gnn_forward.1} parent=11 // pred_check_branch
        %346 = sbr.rel (%p344) target = $region20
      $region19: #{simple_gnn_forward.1} parent=11 // pred_region
        %p347 = scmp.lt.s32.totalorder %s29, 0
        %s348 = scalar_select %p347, %s29, 0
        %p349 = scmp.lt.s32.totalorder %s30, 0
        %s350 = scalar_select %p349, %s30, 0
        %s351 = smul.addr %s350, 16
        %s352 = smul.addr %s348, 16
        %s353 = sadd.s32 %s351, %s352
        %s354 = smul.addr %s353, 4
        %s355 = scalar_lea.vmem %s1, %s354
      $region20: #{simple_gnn_forward.1} parent=11 // pred_fallthru
        _
      // Predicated region
      $region21: #{simple_gnn_forward.1} parent=11 // pred_check
        %p356 = pneg %p107
      $region22: #{simple_gnn_forward.1} parent=11 // pred_check_branch
        %358 = sbr.rel (%p356) target = $region24
      $region23: #{simple_gnn_forward.1} parent=11 // pred_region
        _
      $region24: #{simple_gnn_forward.1} parent=11 // pred_fallthru
        _
      // Predicated region
      $region25: #{simple_gnn_forward.1} parent=11 // pred_check
        %p359 = pneg %p128
      $region26: #{simple_gnn_forward.1} parent=11 // pred_check_branch
        %361 = sbr.rel (%p359) target = $region28
      $region27: #{simple_gnn_forward.1} parent=11 // pred_region
        _
      $region28: #{simple_gnn_forward.1} parent=11 // pred_fallthru
        _
      // Predicated region
      $region29: #{simple_gnn_forward.1} parent=11 // pred_check
        %p362 = pneg %p149
      $region30: #{simple_gnn_forward.1} parent=11 // pred_check_branch
        %364 = sbr.rel (%p362) target = $region32
      $region31: #{simple_gnn_forward.1} parent=11 // pred_region
        _
      $region32: #{simple_gnn_forward.1} parent=11 // pred_fallthru
        _
      // Predicated region
      $region33: #{simple_gnn_forward.1} parent=11 // pred_check
        %p365 = pneg %p170
      $region34: #{simple_gnn_forward.1} parent=11 // pred_check_branch
        %367 = sbr.rel (%p365) target = $region36
      $region35: #{simple_gnn_forward.1} parent=11 // pred_region
        _
      $region36: #{simple_gnn_forward.1} parent=11 // pred_fallthru
        _
      // Predicated region
      $region37: #{simple_gnn_forward.1} parent=11 // pred_check
        %p368 = pneg %p191
      $region38: #{simple_gnn_forward.1} parent=11 // pred_check_branch
        %370 = sbr.rel (%p368) target = $region40
      $region39: #{simple_gnn_forward.1} parent=11 // pred_region
        _
      $region40: #{simple_gnn_forward.1} parent=11 // pred_fallthru
        _
      // Predicated region
      $region41: #{simple_gnn_forward.1} parent=11 // pred_check
        %p371 = pneg %p212
      $region42: #{simple_gnn_forward.1} parent=11 // pred_check_branch
        %373 = sbr.rel (%p371) target = $region44
      $region43: #{simple_gnn_forward.1} parent=11 // pred_region
        _
      $region44: #{simple_gnn_forward.1} parent=11 // pred_fallthru
        _
      // Predicated region
      $region45: #{simple_gnn_forward.1} parent=11 // pred_check
        %p374 = pneg %p233
      $region46: #{simple_gnn_forward.1} parent=11 // pred_check_branch
        %376 = sbr.rel (%p374) target = $region48
      $region47: #{simple_gnn_forward.1} parent=11 // pred_region
        _
      $region48: #{simple_gnn_forward.1} parent=11 // pred_fallthru
        _
      // Predicated region
      $region49: #{simple_gnn_forward.1} parent=11 // pred_check
        %p377 = pneg %p254
      $region50: #{simple_gnn_forward.1} parent=11 // pred_check_branch
        %379 = sbr.rel (%p377) target = $region52
      $region51: #{simple_gnn_forward.1} parent=11 // pred_region
        _
      $region52: #{simple_gnn_forward.1} parent=11 // pred_fallthru
        _
      // Predicated region
      $region53: #{simple_gnn_forward.1} parent=11 // pred_check
        %p380 = pneg %p275
      $region54: #{simple_gnn_forward.1} parent=11 // pred_check_branch
        %382 = sbr.rel (%p380) target = $region56
      $region55: #{simple_gnn_forward.1} parent=11 // pred_region
        _
      $region56: #{simple_gnn_forward.1} parent=11 // pred_fallthru
        _
      // Predicated region
      $region57: #{simple_gnn_forward.1} parent=11 // pred_check
        %p383 = pneg %p296
      $region58: #{simple_gnn_forward.1} parent=11 // pred_check_branch
        %385 = sbr.rel (%p383) target = $region60
      $region59: #{simple_gnn_forward.1} parent=11 // pred_region
        _
      $region60: #{simple_gnn_forward.1} parent=11 // pred_fallthru
        _
    $region12: #{simple_gnn_forward.1} parent=5 // pred_fallthru
      _
    %p386 = scmp.lt.s32.totalorder %s18, 3
    // Predicated region
    $region61: #{simple_gnn_forward.1} parent=5 // pred_check
      %p387 = pneg %p386
    $region62: #{simple_gnn_forward.1} parent=5 // pred_check_branch
      %389 = sbr.rel (%p387) target = $region64
    $region63: #{simple_gnn_forward.1} parent=5 // pred_region
      _
    $region64: #{simple_gnn_forward.1} parent=5 // pred_fallthru
      _
    %p390 = scmp.le.s32.totalorder 1, %s18
    %p391 = scmp.lt.s32.totalorder %s18, 4
    %p392 = pnand %p390, %p391
    %p393 = pneg %p392
    // Predicated region
    $region65: #{simple_gnn_forward.1} parent=5 // pred_check
      _
    $region66: #{simple_gnn_forward.1} parent=5 // pred_check_branch
      %395 = sbr.rel (%p392) target = $region68
    $region67: #{simple_gnn_forward.1} parent=5 // pred_region
      %s396 = ssub.s32 %s18, 1
      %p397 = pneg %p58
      %p398 = pneg %p55
      %p399 = scmp.lt.s32.totalorder %s29, 0
      %s400 = scalar_select %p399, %s29, 0
      %p401 = scmp.lt.s32.totalorder %s30, 0
      %s402 = scalar_select %p401, %s30, 0
      %s403 = smul.addr %s402, 16
      %s404 = smul.addr %s400, 16
      %s405 = sadd.s32 %s403, %s404
      %s406 = smul.addr %s405, 4
      %s407 = scalar_lea.vmem %s1, %s406
      %p408 = pneg %p86
      %p409 = pneg %p83
      %p410 = pneg %p107
      %p411 = pneg %p104
      %p412 = pneg %p128
      %p413 = pneg %p125
      %p414 = pneg %p149
      %p415 = pneg %p146
      %p416 = pneg %p170
      %p417 = pneg %p167
      %p418 = pneg %p191
      %p419 = pneg %p188
      %p420 = pneg %p212
      %p421 = pneg %p209
      %p422 = pneg %p233
      %p423 = pneg %p230
      %p424 = pneg %p254
      %p425 = pneg %p251
      %p426 = pneg %p275
      %p427 = pneg %p272
      %p428 = pneg %p296
      %p429 = pneg %p293
      %p430 = pneg %p326
      %p431 = pneg %p323
      %p432 = scmp.eq.s32.totalorder %s28, 2
      %s433 = scalar_select %p432, %s29, 0
      %s434 = smul.u32 16, %s433
      %p435 = scmp.lt.s32.totalorder %s434, 15
      %s436 = scalar_select %p435, %s434, 15
      %s437 = smul.addr %s436, 8
      %s438 = scalar_lea.vmem %s12, %s437
      %p439 = scmp.lt.s32.totalorder %s29, 0
      %s440 = scalar_select %p439, %s29, 0
      %p441 = scmp.lt.s32.totalorder %s30, 0
      %s442 = scalar_select %p441, %s30, 0
      %s443 = smul.addr %s442, 16
      %s444 = smul.addr %s440, 16
      %s445 = sadd.s32 %s443, %s444
      %s446 = smul.addr %s445, 4
      %s447 = scalar_lea.vmem %s1, %s446
      %p448 = scmp.eq.s32.totalorder %s28, 2
      %s449 = scalar_select %p448, %s29, 0
      %s450 = smul.u32 16, %s449
      %p451 = scmp.lt.s32.totalorder %s450, 15
      %s452 = scalar_select %p451, %s450, 15
      %s453 = smul.addr %s452, 8
      %s454 = scalar_lea.vmem %s12, %s453
      %p455 = scmp.eq.s32.totalorder %s28, 2
      %s456 = scalar_select %p455, %s29, 0
      %s457 = smul.u32 16, %s456
      %p459 = scmp.eq.s32.totalorder %s28, 0
      %p460 = scmp.eq.s32.totalorder %s29, 0
      %p461 = pnand %p459, %p460
      %p462 = pneg %p461
      %p463 = scmp.eq.s32.totalorder %s30, 0
      %p464 = pnand %p462, %p463
      %p465 = pneg %p464
      // Predicated region
      $region69: #{simple_gnn_forward.1} parent=67 // pred_check
        _
      $region70: #{simple_gnn_forward.1} parent=67 // pred_check_branch
        %467 = sbr.rel (%p464) target = $region72
      $region71: #{simple_gnn_forward.1} parent=67 // pred_region
        %v468 = vld [vmem:[%s2] sm:$0xf]
        %v469 = vld [vmem:[%s2 + $0x4] sm:$0xf]
        %v470 = vld [vmem:[%s2 + $0x8] sm:$0xf]
        %v471 = vld [vmem:[%s2 + $0xc] sm:$0xf]
        %v472 = vld [vmem:[%s2 + $0x10] sm:$0xf]
        %v473 = vld [vmem:[%s2 + $0x14] sm:$0xf]
        %v474 = vld [vmem:[%s2 + $0x18] sm:$0xf]
        %v475 = vld [vmem:[%s2 + $0x1c] sm:$0xf]
        %v476 = vld [vmem:[%s2 + $0x20] sm:$0xf]
        %v477 = vld [vmem:[%s2 + $0x24] sm:$0xf]
        %v478 = vld [vmem:[%s2 + $0x28] sm:$0xf]
        %v479 = vld [vmem:[%s2 + $0x2c] sm:$0xf]
        %v480 = vld [vmem:[%s2 + $0x30] sm:$0xf]
        %v481 = vld [vmem:[%s2 + $0x34] sm:$0xf]
        %v482 = vld [vmem:[%s2 + $0x38] sm:$0xf]
        %v483 = vld [vmem:[%s2 + $0x3c] sm:$0xf]
        %v484 = vld [vmem:[%s3] sm:$0x1]
        %v485 = vld [vmem:[%s4] sm:$0xf]
        %v486 = vld [vmem:[%s4 + $0x4] sm:$0xf]
        %v487 = vld [vmem:[%s4 + $0x8] sm:$0xf]
        %v488 = vld [vmem:[%s4 + $0xc] sm:$0xf]
        %v489 = vld [vmem:[%s4 + $0x10] sm:$0xf]
        %v490 = vld [vmem:[%s4 + $0x14] sm:$0xf]
        %v491 = vld [vmem:[%s4 + $0x18] sm:$0xf]
        %v492 = vld [vmem:[%s4 + $0x1c] sm:$0xf]
        %v493 = vld [vmem:[%s4 + $0x20] sm:$0xf]
        %v494 = vld [vmem:[%s4 + $0x24] sm:$0xf]
        %v495 = vld [vmem:[%s4 + $0x28] sm:$0xf]
        %v496 = vld [vmem:[%s4 + $0x2c] sm:$0xf]
        %v497 = vld [vmem:[%s4 + $0x30] sm:$0xf]
        %v498 = vld [vmem:[%s4 + $0x34] sm:$0xf]
        %v499 = vld [vmem:[%s4 + $0x38] sm:$0xf]
        %v500 = vld [vmem:[%s4 + $0x3c] sm:$0xf]
        %v501 = vld [vmem:[%s5] sm:$0x1]
        %v502 = vld [vmem:[%s0] sm:$0xf]
        %v503 = vld [vmem:[%s0 + $0x4] sm:$0xf]
        %v504 = vld [vmem:[%s0 + $0x8] sm:$0xf]
        %v505 = vld [vmem:[%s0 + $0xc] sm:$0xf]
        %v506 = vld [vmem:[%s0 + $0x10] sm:$0xf]
        %v507 = vld [vmem:[%s0 + $0x14] sm:$0xf]
        %v508 = vld [vmem:[%s0 + $0x18] sm:$0xf]
        %v509 = vld [vmem:[%s0 + $0x1c] sm:$0xf]
        %v510 = vld [vmem:[%s0 + $0x20] sm:$0xf]
        %v511 = vld [vmem:[%s0 + $0x24] sm:$0xf]
        %v512 = vld [vmem:[%s0 + $0x28] sm:$0xf]
        %v513 = vld [vmem:[%s0 + $0x2c] sm:$0xf]
        %v514 = vld [vmem:[%s0 + $0x30] sm:$0xf]
        %v515 = vld [vmem:[%s0 + $0x34] sm:$0xf]
        %v516 = vld [vmem:[%s0 + $0x38] sm:$0xf]
        %v517 = vld [vmem:[%s0 + $0x3c] sm:$0xf]
        %v519 = vlaneseq
        %v520 = vshrl.u32 %v519, 7
        %v521 = vsub.s32 0, %v520
        %v522 = vrot.slane %v484, %v521
        %v540 = vunpack.c.l.b16 %v502
        %v541 = vunpack.c.l.b16 %v503
        %v542 = vunpack.c.l.b16 %v504
        %v543 = vunpack.c.l.b16 %v505
        %v544 = vunpack.c.l.b16 %v506
        %v545 = vunpack.c.l.b16 %v507
        %v546 = vunpack.c.l.b16 %v508
        %v547 = vunpack.c.l.b16 %v509
        %v548 = vunpack.c.l.b16 %v510
        %v549 = vunpack.c.l.b16 %v511
        %v550 = vunpack.c.l.b16 %v512
        %v551 = vunpack.c.l.b16 %v513
        %v552 = vunpack.c.l.b16 %v514
        %v553 = vunpack.c.l.b16 %v515
        %v554 = vunpack.c.l.b16 %v516
        %v555 = vunpack.c.l.b16 %v517
        %v556 = vpack.c.b16 %v541, %v540
        %v557 = vpack.c.b16 %v543, %v542
        %v558 = vpack.c.b16 %v545, %v544
        %v559 = vpack.c.b16 %v547, %v546
        %v560 = vpack.c.b16 %v549, %v548
        %v561 = vpack.c.b16 %v551, %v550
        %v562 = vpack.c.b16 %v553, %v552
        %v563 = vpack.c.b16 %v555, %v554
        %v588 = vunpack.c.l.b16 %v468
        %v589 = vunpack.c.l.b16 %v469
        %v590 = vunpack.c.l.b16 %v470
        %v591 = vunpack.c.l.b16 %v471
        %v592 = vunpack.c.l.b16 %v472
        %v593 = vunpack.c.l.b16 %v473
        %v594 = vunpack.c.l.b16 %v474
        %v595 = vunpack.c.l.b16 %v475
        %v596 = vunpack.c.l.b16 %v476
        %v597 = vunpack.c.l.b16 %v477
        %v598 = vunpack.c.l.b16 %v478
        %v599 = vunpack.c.l.b16 %v479
        %v600 = vunpack.c.l.b16 %v480
        %v601 = vunpack.c.l.b16 %v481
        %v602 = vunpack.c.l.b16 %v482
        %v603 = vunpack.c.l.b16 %v483
        %v604 = vpack.c.b16 %v589, %v588
        %v605 = vpack.c.b16 %v591, %v590
        %v606 = vpack.c.b16 %v593, %v592
        %v607 = vpack.c.b16 %v595, %v594
        %v608 = vpack.c.b16 %v597, %v596
        %v609 = vpack.c.b16 %v599, %v598
        %v610 = vpack.c.b16 %v601, %v600
        %v611 = vpack.c.b16 %v603, %v602
        %620 = vmatprep.subr.bf16.mxu0 0
        %621 = vmatpush1.bf16.msra.mxu0 %v611
        %622 = vmatprep.subr.bf16.mxu0 0
        %623 = vmatpush1.bf16.msra.mxu0 %v610
        %624 = vmatprep.subr.bf16.mxu0 0
        %625 = vmatpush1.bf16.msra.mxu0 %v609
        %626 = vmatprep.subr.bf16.mxu0 0
        %627 = vmatpush1.bf16.msra.mxu0 %v608
        %628 = vmatprep.subr.bf16.mxu0 0
        %629 = vmatpush1.bf16.msra.mxu0 %v607
        %630 = vmatprep.subr.bf16.mxu0 0
        %631 = vmatpush1.bf16.msra.mxu0 %v606
        %632 = vmatprep.subr.bf16.mxu0 0
        %633 = vmatpush1.bf16.msra.mxu0 %v605
        %634 = vmatprep.subr.bf16.mxu0 0
        %635 = vmatpush1.bf16.msra.mxu0 %v604
        %636 = vmatprep.subr.bf16.mxu0 0
        %637 = vmatpush2.bf16.msra.mxu0 0
        %638 = vmatprep.subr.bf16.mxu0 0
        %639 = vmatpush2.bf16.msra.mxu0 0
        %640 = vmatprep.subr.bf16.mxu0 0
        %641 = vmatpush2.bf16.msra.mxu0 0
        %642 = vmatprep.subr.bf16.mxu0 0
        %643 = vmatpush2.bf16.msra.mxu0 0
        %644 = vmatprep.subr.bf16.mxu0 0
        %645 = vmatpush2.bf16.msra.mxu0 0
        %646 = vmatprep.subr.bf16.mxu0 0
        %647 = vmatpush2.bf16.msra.mxu0 0
        %648 = vmatprep.subr.bf16.mxu0 0
        %649 = vmatpush2.bf16.msra.mxu0 0
        %650 = vmatprep.subr.bf16.mxu0 0
        %651 = vmatpush2.bf16.msra.mxu0 0
        %652 = vmatprep.mubr.bf16.mxu0 0
        %653 = vmatmul.mubr.bf16.gmra.mxu0 %v556
        %v654 = vpop.f32.mrf.mxu0
        %v655 = vadd.f32 %v522, %v654
        %v656 = vpop.f32.mrf.mxu0
        %v657 = vpop.f32.mrf.mxu0
        %v658 = vadd.f32 %v522, %v657
        %v659 = vpop.f32.mrf.mxu0
        %660 = vmatprep.mubr.bf16.mxu0 0
        %661 = vmatmul.mubr.bf16.gmra.mxu0 %v557
        %v662 = vpop.f32.mrf.mxu0
        %v663 = vadd.f32 %v522, %v662
        %v664 = vpop.f32.mrf.mxu0
        %v665 = vpop.f32.mrf.mxu0
        %v666 = vadd.f32 %v522, %v665
        %v667 = vpop.f32.mrf.mxu0
        %668 = vmatprep.mubr.bf16.mxu0 0
        %669 = vmatmul.mubr.bf16.gmra.mxu0 %v558
        %v670 = vpop.f32.mrf.mxu0
        %v671 = vadd.f32 %v522, %v670
        %v672 = vpop.f32.mrf.mxu0
        %v673 = vpop.f32.mrf.mxu0
        %v674 = vadd.f32 %v522, %v673
        %v675 = vpop.f32.mrf.mxu0
        %676 = vmatprep.mubr.bf16.mxu0 0
        %677 = vmatmul.mubr.bf16.gmra.mxu0 %v559
        %v678 = vpop.f32.mrf.mxu0
        %v679 = vadd.f32 %v522, %v678
        %v680 = vpop.f32.mrf.mxu0
        %v681 = vpop.f32.mrf.mxu0
        %v682 = vadd.f32 %v522, %v681
        %v683 = vpop.f32.mrf.mxu0
        %684 = vmatprep.mubr.bf16.mxu0 0
        %685 = vmatmul.mubr.bf16.gmra.mxu0 %v560
        %v686 = vpop.f32.mrf.mxu0
        %v687 = vadd.f32 %v522, %v686
        %v688 = vpop.f32.mrf.mxu0
        %v689 = vpop.f32.mrf.mxu0
        %v690 = vadd.f32 %v522, %v689
        %v691 = vpop.f32.mrf.mxu0
        %692 = vmatprep.mubr.bf16.mxu0 0
        %693 = vmatmul.mubr.bf16.gmra.mxu0 %v561
        %v694 = vpop.f32.mrf.mxu0
        %v695 = vadd.f32 %v522, %v694
        %v696 = vpop.f32.mrf.mxu0
        %v697 = vpop.f32.mrf.mxu0
        %v698 = vadd.f32 %v522, %v697
        %v699 = vpop.f32.mrf.mxu0
        %700 = vmatprep.mubr.bf16.mxu0 0
        %701 = vmatmul.mubr.bf16.gmra.mxu0 %v562
        %v702 = vpop.f32.mrf.mxu0
        %v703 = vadd.f32 %v522, %v702
        %v704 = vpop.f32.mrf.mxu0
        %v705 = vpop.f32.mrf.mxu0
        %v706 = vadd.f32 %v522, %v705
        %v707 = vpop.f32.mrf.mxu0
        %708 = vmatprep.mubr.bf16.mxu0 0
        %709 = vmatmul.mubr.bf16.gmra.mxu0 %v563
        %v710 = vpop.f32.mrf.mxu0
        %v711 = vadd.f32 %v522, %v710
        %v712 = vpop.f32.mrf.mxu0
        %v713 = vpop.f32.mrf.mxu0
        %v714 = vadd.f32 %v522, %v713
        %v715 = vpop.f32.mrf.mxu0
        %716 = vdwg.mxu0
        %v717 = vmax.f32 %v655, 0.0
        %v718 = vmax.f32 %v658, 0.0
        %v719 = vmax.f32 %v663, 0.0
        %v720 = vmax.f32 %v666, 0.0
        %v721 = vmax.f32 %v671, 0.0
        %v722 = vmax.f32 %v674, 0.0
        %v723 = vmax.f32 %v679, 0.0
        %v724 = vmax.f32 %v682, 0.0
        %v725 = vmax.f32 %v687, 0.0
        %v726 = vmax.f32 %v690, 0.0
        %v727 = vmax.f32 %v695, 0.0
        %v728 = vmax.f32 %v698, 0.0
        %v729 = vmax.f32 %v703, 0.0
        %v730 = vmax.f32 %v706, 0.0
        %v731 = vmax.f32 %v711, 0.0
        %v732 = vmax.f32 %v714, 0.0
        %733 = vst [vmem:[#allocation2] sm:$0xff] %v717
        %734 = vst [vmem:[#allocation2 + $0x8] sm:$0xff] %v718
        %735 = vst [vmem:[#allocation2 + $0x10] sm:$0xff] %v719
        %736 = vst [vmem:[#allocation2 + $0x18] sm:$0xff] %v720
        %737 = vst [vmem:[#allocation2 + $0x20] sm:$0xff] %v721
        %738 = vst [vmem:[#allocation2 + $0x28] sm:$0xff] %v722
        %739 = vst [vmem:[#allocation2 + $0x30] sm:$0xff] %v723
        %740 = vst [vmem:[#allocation2 + $0x38] sm:$0xff] %v724
        %741 = vst [vmem:[#allocation2 + $0x40] sm:$0xff] %v725
        %742 = vst [vmem:[#allocation2 + $0x48] sm:$0xff] %v726
        %743 = vst [vmem:[#allocation2 + $0x50] sm:$0xff] %v727
        %744 = vst [vmem:[#allocation2 + $0x58] sm:$0xff] %v728
        %745 = vst [vmem:[#allocation2 + $0x60] sm:$0xff] %v729
        %746 = vst [vmem:[#allocation2 + $0x68] sm:$0xff] %v730
        %747 = vst [vmem:[#allocation2 + $0x70] sm:$0xff] %v731
        %748 = vst [vmem:[#allocation2 + $0x78] sm:$0xff] %v732
        %v749 = vpack.c.bf16 %v718, %v717
        %v750 = vpack.c.bf16 %v720, %v719
        %v751 = vpack.c.bf16 %v722, %v721
        %v752 = vpack.c.bf16 %v724, %v723
        %v753 = vpack.c.bf16 %v726, %v725
        %v754 = vpack.c.bf16 %v728, %v727
        %v755 = vpack.c.bf16 %v730, %v729
        %v756 = vpack.c.bf16 %v732, %v731
        %v758 = vlaneseq
        %v759 = vshrl.u32 %v758, 7
        %v760 = vsub.s32 0, %v759
        %v761 = vrot.slane %v501, %v760
        %v779 = vunpack.c.l.b16 %v485
        %v780 = vunpack.c.l.b16 %v486
        %v781 = vunpack.c.l.b16 %v487
        %v782 = vunpack.c.l.b16 %v488
        %v783 = vunpack.c.l.b16 %v489
        %v784 = vunpack.c.l.b16 %v490
        %v785 = vunpack.c.l.b16 %v491
        %v786 = vunpack.c.l.b16 %v492
        %v787 = vunpack.c.l.b16 %v493
        %v788 = vunpack.c.l.b16 %v494
        %v789 = vunpack.c.l.b16 %v495
        %v790 = vunpack.c.l.b16 %v496
        %v791 = vunpack.c.l.b16 %v497
        %v792 = vunpack.c.l.b16 %v498
        %v793 = vunpack.c.l.b16 %v499
        %v794 = vunpack.c.l.b16 %v500
        %v795 = vpack.c.b16 %v780, %v779
        %v796 = vpack.c.b16 %v782, %v781
        %v797 = vpack.c.b16 %v784, %v783
        %v798 = vpack.c.b16 %v786, %v785
        %v799 = vpack.c.b16 %v788, %v787
        %v800 = vpack.c.b16 %v790, %v789
        %v801 = vpack.c.b16 %v792, %v791
        %v802 = vpack.c.b16 %v794, %v793
        %811 = vmatprep.subr.bf16.mxu0 0
        %812 = vmatpush1.bf16.msra.mxu0 %v802
        %813 = vmatprep.subr.bf16.mxu0 0
        %814 = vmatpush1.bf16.msra.mxu0 %v801
        %815 = vmatprep.subr.bf16.mxu0 0
        %816 = vmatpush1.bf16.msra.mxu0 %v800
        %817 = vmatprep.subr.bf16.mxu0 0
        %818 = vmatpush1.bf16.msra.mxu0 %v799
        %819 = vmatprep.subr.bf16.mxu0 0
        %820 = vmatpush1.bf16.msra.mxu0 %v798
        %821 = vmatprep.subr.bf16.mxu0 0
        %822 = vmatpush1.bf16.msra.mxu0 %v797
        %823 = vmatprep.subr.bf16.mxu0 0
        %824 = vmatpush1.bf16.msra.mxu0 %v796
        %825 = vmatprep.subr.bf16.mxu0 0
        %826 = vmatpush1.bf16.msra.mxu0 %v795
        %827 = vmatprep.subr.bf16.mxu0 0
        %828 = vmatpush2.bf16.msra.mxu0 0
        %829 = vmatprep.subr.bf16.mxu0 0
        %830 = vmatpush2.bf16.msra.mxu0 0
        %831 = vmatprep.subr.bf16.mxu0 0
        %832 = vmatpush2.bf16.msra.mxu0 0
        %833 = vmatprep.subr.bf16.mxu0 0
        %834 = vmatpush2.bf16.msra.mxu0 0
        %835 = vmatprep.subr.bf16.mxu0 0
        %836 = vmatpush2.bf16.msra.mxu0 0
        %837 = vmatprep.subr.bf16.mxu0 0
        %838 = vmatpush2.bf16.msra.mxu0 0
        %839 = vmatprep.subr.bf16.mxu0 0
        %840 = vmatpush2.bf16.msra.mxu0 0
        %841 = vmatprep.subr.bf16.mxu0 0
        %842 = vmatpush2.bf16.msra.mxu0 0
        %843 = vmatprep.mubr.bf16.mxu0 0
        %844 = vmatmul.mubr.bf16.gmra.mxu0 %v749
        %v845 = vpop.f32.mrf.mxu0
        %v846 = vadd.f32 %v761, %v845
        %v847 = vpop.f32.mrf.mxu0
        %v848 = vpop.f32.mrf.mxu0
        %v849 = vadd.f32 %v761, %v848
        %v850 = vpop.f32.mrf.mxu0
        %851 = vmatprep.mubr.bf16.mxu0 0
        %852 = vmatmul.mubr.bf16.gmra.mxu0 %v750
        %v853 = vpop.f32.mrf.mxu0
        %v854 = vadd.f32 %v761, %v853
        %v855 = vpop.f32.mrf.mxu0
        %v856 = vpop.f32.mrf.mxu0
        %v857 = vadd.f32 %v761, %v856
        %v858 = vpop.f32.mrf.mxu0
        %859 = vmatprep.mubr.bf16.mxu0 0
        %860 = vmatmul.mubr.bf16.gmra.mxu0 %v751
        %v861 = vpop.f32.mrf.mxu0
        %v862 = vadd.f32 %v761, %v861
        %v863 = vpop.f32.mrf.mxu0
        %v864 = vpop.f32.mrf.mxu0
        %v865 = vadd.f32 %v761, %v864
        %v866 = vpop.f32.mrf.mxu0
        %867 = vmatprep.mubr.bf16.mxu0 0
        %868 = vmatmul.mubr.bf16.gmra.mxu0 %v752
        %v869 = vpop.f32.mrf.mxu0
        %v870 = vadd.f32 %v761, %v869
        %v871 = vpop.f32.mrf.mxu0
        %v872 = vpop.f32.mrf.mxu0
        %v873 = vadd.f32 %v761, %v872
        %v874 = vpop.f32.mrf.mxu0
        %875 = vmatprep.mubr.bf16.mxu0 0
        %876 = vmatmul.mubr.bf16.gmra.mxu0 %v753
        %v877 = vpop.f32.mrf.mxu0
        %v878 = vadd.f32 %v761, %v877
        %v879 = vpop.f32.mrf.mxu0
        %v880 = vpop.f32.mrf.mxu0
        %v881 = vadd.f32 %v761, %v880
        %v882 = vpop.f32.mrf.mxu0
        %883 = vmatprep.mubr.bf16.mxu0 0
        %884 = vmatmul.mubr.bf16.gmra.mxu0 %v754
        %v885 = vpop.f32.mrf.mxu0
        %v886 = vadd.f32 %v761, %v885
        %v887 = vpop.f32.mrf.mxu0
        %v888 = vpop.f32.mrf.mxu0
        %v889 = vadd.f32 %v761, %v888
        %v890 = vpop.f32.mrf.mxu0
        %891 = vmatprep.mubr.bf16.mxu0 0
        %892 = vmatmul.mubr.bf16.gmra.mxu0 %v755
        %v893 = vpop.f32.mrf.mxu0
        %v894 = vadd.f32 %v761, %v893
        %v895 = vpop.f32.mrf.mxu0
        %v896 = vpop.f32.mrf.mxu0
        %v897 = vadd.f32 %v761, %v896
        %v898 = vpop.f32.mrf.mxu0
        %899 = vmatprep.mubr.bf16.mxu0 0
        %900 = vmatmul.mubr.bf16.gmra.mxu0 %v756
        %v901 = vpop.f32.mrf.mxu0
        %v902 = vadd.f32 %v761, %v901
        %v903 = vpop.f32.mrf.mxu0
        %v904 = vpop.f32.mrf.mxu0
        %v905 = vadd.f32 %v761, %v904
        %v906 = vpop.f32.mrf.mxu0
        %907 = vdwg.mxu0
        %v908 = vmax.f32 %v846, 0.0
        %v909 = vmax.f32 %v849, 0.0
        %v910 = vmax.f32 %v854, 0.0
        %v911 = vmax.f32 %v857, 0.0
        %v912 = vmax.f32 %v862, 0.0
        %v913 = vmax.f32 %v865, 0.0
        %v914 = vmax.f32 %v870, 0.0
        %v915 = vmax.f32 %v873, 0.0
        %v916 = vmax.f32 %v878, 0.0
        %v917 = vmax.f32 %v881, 0.0
        %v918 = vmax.f32 %v886, 0.0
        %v919 = vmax.f32 %v889, 0.0
        %v920 = vmax.f32 %v894, 0.0
        %v921 = vmax.f32 %v897, 0.0
        %v922 = vmax.f32 %v902, 0.0
        %v923 = vmax.f32 %v905, 0.0
        %v924 = vpack.c.bf16 %v909, %v908
        %v925 = vpack.c.bf16 %v911, %v910
        %v926 = vpack.c.bf16 %v913, %v912
        %v927 = vpack.c.bf16 %v915, %v914
        %v928 = vpack.c.bf16 %v917, %v916
        %v929 = vpack.c.bf16 %v919, %v918
        %v930 = vpack.c.bf16 %v921, %v920
        %v931 = vpack.c.bf16 %v923, %v922
        %v940 = vunpack.c.l.b16 %v924
        %v941 = vunpack.c.h.b16 %v924
        %v942 = vunpack.c.l.b16 %v925
        %v943 = vunpack.c.h.b16 %v925
        %v944 = vunpack.c.l.b16 %v926
        %v945 = vunpack.c.h.b16 %v926
        %v946 = vunpack.c.l.b16 %v927
        %v947 = vunpack.c.h.b16 %v927
        %v948 = vunpack.c.l.b16 %v928
        %v949 = vunpack.c.h.b16 %v928
        %v950 = vunpack.c.l.b16 %v929
        %v951 = vunpack.c.h.b16 %v929
        %v952 = vunpack.c.l.b16 %v930
        %v953 = vunpack.c.h.b16 %v930
        %v954 = vunpack.c.l.b16 %v931
        %v955 = vunpack.c.h.b16 %v931
        %v956 = vpack.c.b16 %v940, %v940
        %v957 = vpack.c.b16 %v941, %v941
        %v958 = vpack.c.b16 %v942, %v942
        %v959 = vpack.c.b16 %v943, %v943
        %v960 = vpack.c.b16 %v944, %v944
        %v961 = vpack.c.b16 %v945, %v945
        %v962 = vpack.c.b16 %v946, %v946
        %v963 = vpack.c.b16 %v947, %v947
        %v964 = vpack.c.b16 %v948, %v948
        %v965 = vpack.c.b16 %v949, %v949
        %v966 = vpack.c.b16 %v950, %v950
        %v967 = vpack.c.b16 %v951, %v951
        %v968 = vpack.c.b16 %v952, %v952
        %v969 = vpack.c.b16 %v953, %v953
        %v970 = vpack.c.b16 %v954, %v954
        %v971 = vpack.c.b16 %v955, %v955
        %988 = vst [vmem:[#allocation3] sm:$0xf] %v956
        %989 = vst [vmem:[#allocation3 + $0x4] sm:$0xf] %v957
        %990 = vst [vmem:[#allocation3 + $0x8] sm:$0xf] %v958
        %991 = vst [vmem:[#allocation3 + $0xc] sm:$0xf] %v959
        %992 = vst [vmem:[#allocation3 + $0x10] sm:$0xf] %v960
        %993 = vst [vmem:[#allocation3 + $0x14] sm:$0xf] %v961
        %994 = vst [vmem:[#allocation3 + $0x18] sm:$0xf] %v962
        %995 = vst [vmem:[#allocation3 + $0x1c] sm:$0xf] %v963
        %996 = vst [vmem:[#allocation3 + $0x20] sm:$0xf] %v964
        %997 = vst [vmem:[#allocation3 + $0x24] sm:$0xf] %v965
        %998 = vst [vmem:[#allocation3 + $0x28] sm:$0xf] %v966
        %999 = vst [vmem:[#allocation3 + $0x2c] sm:$0xf] %v967
        %1000 = vst [vmem:[#allocation3 + $0x30] sm:$0xf] %v968
        %1001 = vst [vmem:[#allocation3 + $0x34] sm:$0xf] %v969
        %1002 = vst [vmem:[#allocation3 + $0x38] sm:$0xf] %v970
        %1003 = vst [vmem:[#allocation3 + $0x3c] sm:$0xf] %v971
      $region72: #{simple_gnn_forward.1} parent=67 // pred_fallthru
        _
      // Predicated region
      $region73: #{simple_gnn_forward.1} parent=67 // pred_check
        %p1004 = pneg %p463
      $region74: #{simple_gnn_forward.1} parent=67 // pred_check_branch
        %1006 = sbr.rel (%p1004) target = $region76
      $region75: #{simple_gnn_forward.1} parent=67 // pred_region
        %1007 = vst [vmem:[#allocation4] sm:$0xff] 0.0
        %1008 = vst [vmem:[#allocation4 + $0x8] sm:$0xff] 0.0
        %1009 = vst [vmem:[#allocation4 + $0x10] sm:$0xff] 0.0
        %1010 = vst [vmem:[#allocation4 + $0x18] sm:$0xff] 0.0
        %1011 = vst [vmem:[#allocation4 + $0x20] sm:$0xff] 0.0
        %1012 = vst [vmem:[#allocation4 + $0x28] sm:$0xff] 0.0
        %1013 = vst [vmem:[#allocation4 + $0x30] sm:$0xff] 0.0
        %1014 = vst [vmem:[#allocation4 + $0x38] sm:$0xff] 0.0
        %1015 = vst [vmem:[#allocation4 + $0x40] sm:$0xff] 0.0
        %1016 = vst [vmem:[#allocation4 + $0x48] sm:$0xff] 0.0
        %1017 = vst [vmem:[#allocation4 + $0x50] sm:$0xff] 0.0
        %1018 = vst [vmem:[#allocation4 + $0x58] sm:$0xff] 0.0
        %1019 = vst [vmem:[#allocation4 + $0x60] sm:$0xff] 0.0
        %1020 = vst [vmem:[#allocation4 + $0x68] sm:$0xff] 0.0
        %1021 = vst [vmem:[#allocation4 + $0x70] sm:$0xff] 0.0
        %1022 = vst [vmem:[#allocation4 + $0x78] sm:$0xff] 0.0
      $region76: #{simple_gnn_forward.1} parent=67 // pred_fallthru
        _
      %v1023 = vld [vmem:[#allocation4] sm:$0xff]
      %v1024 = vld [vmem:[#allocation4 + $0x8] sm:$0xff]
      %v1025 = vld [vmem:[#allocation4 + $0x10] sm:$0xff]
      %v1026 = vld [vmem:[#allocation4 + $0x18] sm:$0xff]
      %v1027 = vld [vmem:[#allocation4 + $0x20] sm:$0xff]
      %v1028 = vld [vmem:[#allocation4 + $0x28] sm:$0xff]
      %v1029 = vld [vmem:[#allocation4 + $0x30] sm:$0xff]
      %v1030 = vld [vmem:[#allocation4 + $0x38] sm:$0xff]
      %v1031 = vld [vmem:[#allocation4 + $0x40] sm:$0xff]
      %v1032 = vld [vmem:[#allocation4 + $0x48] sm:$0xff]
      %v1033 = vld [vmem:[#allocation4 + $0x50] sm:$0xff]
      %v1034 = vld [vmem:[#allocation4 + $0x58] sm:$0xff]
      %v1035 = vld [vmem:[#allocation4 + $0x60] sm:$0xff]
      %v1036 = vld [vmem:[#allocation4 + $0x68] sm:$0xff]
      %v1037 = vld [vmem:[#allocation4 + $0x70] sm:$0xff]
      %v1038 = vld [vmem:[#allocation4 + $0x78] sm:$0xff]
      %v1039 = vld [vmem:[%s447] sm:$0xf]
      %v1040 = vld [vmem:[%s447 + $0x4] sm:$0xf]
      %v1041 = vld [vmem:[%s447 + $0x8] sm:$0xf]
      %v1042 = vld [vmem:[%s447 + $0xc] sm:$0xf]
      %v1043 = vld [vmem:[%s447 + $0x10] sm:$0xf]
      %v1044 = vld [vmem:[%s447 + $0x14] sm:$0xf]
      %v1045 = vld [vmem:[%s447 + $0x18] sm:$0xf]
      %v1046 = vld [vmem:[%s447 + $0x1c] sm:$0xf]
      %v1047 = vld [vmem:[%s447 + $0x20] sm:$0xf]
      %v1048 = vld [vmem:[%s447 + $0x24] sm:$0xf]
      %v1049 = vld [vmem:[%s447 + $0x28] sm:$0xf]
      %v1050 = vld [vmem:[%s447 + $0x2c] sm:$0xf]
      %v1051 = vld [vmem:[%s447 + $0x30] sm:$0xf]
      %v1052 = vld [vmem:[%s447 + $0x34] sm:$0xf]
      %v1053 = vld [vmem:[%s447 + $0x38] sm:$0xf]
      %v1054 = vld [vmem:[%s447 + $0x3c] sm:$0xf]
      %p1055 = scmp.lt.s32.totalorder %s28, 0
      %s1056 = ssub.s32 0, %s28
      %s1057 = scalar_select %p1055, %s1056, %s28
      %s1058 = sand.u32 %s1057, 1
      %s1059 = ssub.s32 0, %s1058
      %s1060 = scalar_select %p1055, %s1059, %s1058
      %p1061 = scmp.ne.s32.totalorder %s1060, 0
      %p1062 = scmp.lt.s32.totalorder %s1060, 0
      %p1063 = pnand %p1062, %p1061
      %p1064 = pneg %p1063
      %s1065 = sadd.s32 %s1060, 2
      %s1066 = scalar_select %p1064, %s1065, %s1060
      %s1067 = sadd.s32 %s1066, %s30
      %s1068 = smul.u32 %s1067, 16
      %s1069 = smul.addr %s1068, 4
      %s1070 = scalar_lea.vmem [#allocation3], %s1069
      %v1071 = vld [vmem:[%s1070] sm:$0xf]
      %v1072 = vld [vmem:[%s1070 + $0x4] sm:$0xf]
      %v1073 = vld [vmem:[%s1070 + $0x8] sm:$0xf]
      %v1074 = vld [vmem:[%s1070 + $0xc] sm:$0xf]
      %v1075 = vld [vmem:[%s1070 + $0x10] sm:$0xf]
      %v1076 = vld [vmem:[%s1070 + $0x14] sm:$0xf]
      %v1077 = vld [vmem:[%s1070 + $0x18] sm:$0xf]
      %v1078 = vld [vmem:[%s1070 + $0x1c] sm:$0xf]
      %v1079 = vld [vmem:[%s1070 + $0x20] sm:$0xf]
      %v1080 = vld [vmem:[%s1070 + $0x24] sm:$0xf]
      %v1081 = vld [vmem:[%s1070 + $0x28] sm:$0xf]
      %v1082 = vld [vmem:[%s1070 + $0x2c] sm:$0xf]
      %v1083 = vld [vmem:[%s1070 + $0x30] sm:$0xf]
      %v1084 = vld [vmem:[%s1070 + $0x34] sm:$0xf]
      %v1085 = vld [vmem:[%s1070 + $0x38] sm:$0xf]
      %v1086 = vld [vmem:[%s1070 + $0x3c] sm:$0xf]
      %v1103 = vunpack.c.l.b16 %v1039
      %v1104 = vunpack.c.l.b16 %v1040
      %v1105 = vunpack.c.l.b16 %v1041
      %v1106 = vunpack.c.l.b16 %v1042
      %v1107 = vunpack.c.l.b16 %v1043
      %v1108 = vunpack.c.l.b16 %v1044
      %v1109 = vunpack.c.l.b16 %v1045
      %v1110 = vunpack.c.l.b16 %v1046
      %v1111 = vunpack.c.l.b16 %v1047
      %v1112 = vunpack.c.l.b16 %v1048
      %v1113 = vunpack.c.l.b16 %v1049
      %v1114 = vunpack.c.l.b16 %v1050
      %v1115 = vunpack.c.l.b16 %v1051
      %v1116 = vunpack.c.l.b16 %v1052
      %v1117 = vunpack.c.l.b16 %v1053
      %v1118 = vunpack.c.l.b16 %v1054
      %v1119 = vpack.c.b16 %v1104, %v1103
      %v1120 = vpack.c.b16 %v1106, %v1105
      %v1121 = vpack.c.b16 %v1108, %v1107
      %v1122 = vpack.c.b16 %v1110, %v1109
      %v1123 = vpack.c.b16 %v1112, %v1111
      %v1124 = vpack.c.b16 %v1114, %v1113
      %v1125 = vpack.c.b16 %v1116, %v1115
      %v1126 = vpack.c.b16 %v1118, %v1117
      %v1151 = vunpack.c.l.b16 %v1071
      %v1152 = vunpack.c.l.b16 %v1072
      %v1153 = vunpack.c.l.b16 %v1073
      %v1154 = vunpack.c.l.b16 %v1074
      %v1155 = vunpack.c.l.b16 %v1075
      %v1156 = vunpack.c.l.b16 %v1076
      %v1157 = vunpack.c.l.b16 %v1077
      %v1158 = vunpack.c.l.b16 %v1078
      %v1159 = vunpack.c.l.b16 %v1079
      %v1160 = vunpack.c.l.b16 %v1080
      %v1161 = vunpack.c.l.b16 %v1081
      %v1162 = vunpack.c.l.b16 %v1082
      %v1163 = vunpack.c.l.b16 %v1083
      %v1164 = vunpack.c.l.b16 %v1084
      %v1165 = vunpack.c.l.b16 %v1085
      %v1166 = vunpack.c.l.b16 %v1086
      %v1167 = vpack.c.b16 %v1152, %v1151
      %v1168 = vpack.c.b16 %v1154, %v1153
      %v1169 = vpack.c.b16 %v1156, %v1155
      %v1170 = vpack.c.b16 %v1158, %v1157
      %v1171 = vpack.c.b16 %v1160, %v1159
      %v1172 = vpack.c.b16 %v1162, %v1161
      %v1173 = vpack.c.b16 %v1164, %v1163
      %v1174 = vpack.c.b16 %v1166, %v1165
      %1183 = vmatprep.subr.bf16.mxu0 0
      %1184 = vmatpush1.bf16.msra.mxu0 %v1174
      %1185 = vmatprep.subr.bf16.mxu0 0
      %1186 = vmatpush1.bf16.msra.mxu0 %v1173
      %1187 = vmatprep.subr.bf16.mxu0 0
      %1188 = vmatpush1.bf16.msra.mxu0 %v1172
      %1189 = vmatprep.subr.bf16.mxu0 0
      %1190 = vmatpush1.bf16.msra.mxu0 %v1171
      %1191 = vmatprep.subr.bf16.mxu0 0
      %1192 = vmatpush1.bf16.msra.mxu0 %v1170
      %1193 = vmatprep.subr.bf16.mxu0 0
      %1194 = vmatpush1.bf16.msra.mxu0 %v1169
      %1195 = vmatprep.subr.bf16.mxu0 0
      %1196 = vmatpush1.bf16.msra.mxu0 %v1168
      %1197 = vmatprep.subr.bf16.mxu0 0
      %1198 = vmatpush1.bf16.msra.mxu0 %v1167
      %1199 = vmatprep.subr.bf16.mxu0 0
      %1200 = vmatpush2.bf16.msra.mxu0 0
      %1201 = vmatprep.subr.bf16.mxu0 0
      %1202 = vmatpush2.bf16.msra.mxu0 0
      %1203 = vmatprep.subr.bf16.mxu0 0
      %1204 = vmatpush2.bf16.msra.mxu0 0
      %1205 = vmatprep.subr.bf16.mxu0 0
      %1206 = vmatpush2.bf16.msra.mxu0 0
      %1207 = vmatprep.subr.bf16.mxu0 0
      %1208 = vmatpush2.bf16.msra.mxu0 0
      %1209 = vmatprep.subr.bf16.mxu0 0
      %1210 = vmatpush2.bf16.msra.mxu0 0
      %1211 = vmatprep.subr.bf16.mxu0 0
      %1212 = vmatpush2.bf16.msra.mxu0 0
      %1213 = vmatprep.subr.bf16.mxu0 0
      %1214 = vmatpush2.bf16.msra.mxu0 0
      %1215 = vmatprep.mubr.bf16.mxu0 0
      %1216 = vmatmul.mubr.bf16.gmra.mxu0 %v1119
      %v1217 = vpop.f32.mrf.mxu0
      %v1218 = vadd.f32 0.0, %v1217
      %v1219 = vpop.f32.mrf.mxu0
      %v1220 = vpop.f32.mrf.mxu0
      %v1221 = vadd.f32 0.0, %v1220
      %v1222 = vpop.f32.mrf.mxu0
      %1223 = vmatprep.mubr.bf16.mxu0 0
      %1224 = vmatmul.mubr.bf16.gmra.mxu0 %v1120
      %v1225 = vpop.f32.mrf.mxu0
      %v1226 = vadd.f32 0.0, %v1225
      %v1227 = vpop.f32.mrf.mxu0
      %v1228 = vpop.f32.mrf.mxu0
      %v1229 = vadd.f32 0.0, %v1228
      %v1230 = vpop.f32.mrf.mxu0
      %1231 = vmatprep.mubr.bf16.mxu0 0
      %1232 = vmatmul.mubr.bf16.gmra.mxu0 %v1121
      %v1233 = vpop.f32.mrf.mxu0
      %v1234 = vadd.f32 0.0, %v1233
      %v1235 = vpop.f32.mrf.mxu0
      %v1236 = vpop.f32.mrf.mxu0
      %v1237 = vadd.f32 0.0, %v1236
      %v1238 = vpop.f32.mrf.mxu0
      %1239 = vmatprep.mubr.bf16.mxu0 0
      %1240 = vmatmul.mubr.bf16.gmra.mxu0 %v1122
      %v1241 = vpop.f32.mrf.mxu0
      %v1242 = vadd.f32 0.0, %v1241
      %v1243 = vpop.f32.mrf.mxu0
      %v1244 = vpop.f32.mrf.mxu0
      %v1245 = vadd.f32 0.0, %v1244
      %v1246 = vpop.f32.mrf.mxu0
      %1247 = vmatprep.mubr.bf16.mxu0 0
      %1248 = vmatmul.mubr.bf16.gmra.mxu0 %v1123
      %v1249 = vpop.f32.mrf.mxu0
      %v1250 = vadd.f32 0.0, %v1249
      %v1251 = vpop.f32.mrf.mxu0
      %v1252 = vpop.f32.mrf.mxu0
      %v1253 = vadd.f32 0.0, %v1252
      %v1254 = vpop.f32.mrf.mxu0
      %1255 = vmatprep.mubr.bf16.mxu0 0
      %1256 = vmatmul.mubr.bf16.gmra.mxu0 %v1124
      %v1257 = vpop.f32.mrf.mxu0
      %v1258 = vadd.f32 0.0, %v1257
      %v1259 = vpop.f32.mrf.mxu0
      %v1260 = vpop.f32.mrf.mxu0
      %v1261 = vadd.f32 0.0, %v1260
      %v1262 = vpop.f32.mrf.mxu0
      %1263 = vmatprep.mubr.bf16.mxu0 0
      %1264 = vmatmul.mubr.bf16.gmra.mxu0 %v1125
      %v1265 = vpop.f32.mrf.mxu0
      %v1266 = vadd.f32 0.0, %v1265
      %v1267 = vpop.f32.mrf.mxu0
      %v1268 = vpop.f32.mrf.mxu0
      %v1269 = vadd.f32 0.0, %v1268
      %v1270 = vpop.f32.mrf.mxu0
      %1271 = vmatprep.mubr.bf16.mxu0 0
      %1272 = vmatmul.mubr.bf16.gmra.mxu0 %v1126
      %v1273 = vpop.f32.mrf.mxu0
      %v1274 = vadd.f32 0.0, %v1273
      %v1275 = vpop.f32.mrf.mxu0
      %v1276 = vpop.f32.mrf.mxu0
      %v1277 = vadd.f32 0.0, %v1276
      %v1278 = vpop.f32.mrf.mxu0
      %1279 = vdwg.mxu0
      %v1280 = vadd.f32 %v1023, %v1218
      %v1281 = vadd.f32 %v1024, %v1221
      %v1282 = vadd.f32 %v1025, %v1226
      %v1283 = vadd.f32 %v1026, %v1229
      %v1284 = vadd.f32 %v1027, %v1234
      %v1285 = vadd.f32 %v1028, %v1237
      %v1286 = vadd.f32 %v1029, %v1242
      %v1287 = vadd.f32 %v1030, %v1245
      %v1288 = vadd.f32 %v1031, %v1250
      %v1289 = vadd.f32 %v1032, %v1253
      %v1290 = vadd.f32 %v1033, %v1258
      %v1291 = vadd.f32 %v1034, %v1261
      %v1292 = vadd.f32 %v1035, %v1266
      %v1293 = vadd.f32 %v1036, %v1269
      %v1294 = vadd.f32 %v1037, %v1274
      %v1295 = vadd.f32 %v1038, %v1277
      %1296 = vst [vmem:[#allocation4] sm:$0xff] %v1280
      %1297 = vst [vmem:[#allocation4 + $0x8] sm:$0xff] %v1281
      %1298 = vst [vmem:[#allocation4 + $0x10] sm:$0xff] %v1282
      %1299 = vst [vmem:[#allocation4 + $0x18] sm:$0xff] %v1283
      %1300 = vst [vmem:[#allocation4 + $0x20] sm:$0xff] %v1284
      %1301 = vst [vmem:[#allocation4 + $0x28] sm:$0xff] %v1285
      %1302 = vst [vmem:[#allocation4 + $0x30] sm:$0xff] %v1286
      %1303 = vst [vmem:[#allocation4 + $0x38] sm:$0xff] %v1287
      %1304 = vst [vmem:[#allocation4 + $0x40] sm:$0xff] %v1288
      %1305 = vst [vmem:[#allocation4 + $0x48] sm:$0xff] %v1289
      %1306 = vst [vmem:[#allocation4 + $0x50] sm:$0xff] %v1290
      %1307 = vst [vmem:[#allocation4 + $0x58] sm:$0xff] %v1291
      %1308 = vst [vmem:[#allocation4 + $0x60] sm:$0xff] %v1292
      %1309 = vst [vmem:[#allocation4 + $0x68] sm:$0xff] %v1293
      %1310 = vst [vmem:[#allocation4 + $0x70] sm:$0xff] %v1294
      %1311 = vst [vmem:[#allocation4 + $0x78] sm:$0xff] %v1295
      // Predicated region
      $region77: #{simple_gnn_forward.1} parent=67 // pred_check
        %p1312 = pneg %p463
      $region78: #{simple_gnn_forward.1} parent=67 // pred_check_branch
        %1314 = sbr.rel (%p1312) target = $region80
      $region79: #{simple_gnn_forward.1} parent=67 // pred_region
        %s1315 = smul.u32 %s29, 128
        %v1316 = vld [vmem:[#allocation4] sm:$0xff]
        %v1317 = vld [vmem:[#allocation4 + $0x8] sm:$0xff]
        %v1318 = vld [vmem:[#allocation4 + $0x10] sm:$0xff]
        %v1319 = vld [vmem:[#allocation4 + $0x18] sm:$0xff]
        %v1320 = vld [vmem:[#allocation4 + $0x20] sm:$0xff]
        %v1321 = vld [vmem:[#allocation4 + $0x28] sm:$0xff]
        %v1322 = vld [vmem:[#allocation4 + $0x30] sm:$0xff]
        %v1323 = vld [vmem:[#allocation4 + $0x38] sm:$0xff]
        %v1324 = vld [vmem:[#allocation4 + $0x40] sm:$0xff]
        %v1325 = vld [vmem:[#allocation4 + $0x48] sm:$0xff]
        %v1326 = vld [vmem:[#allocation4 + $0x50] sm:$0xff]
        %v1327 = vld [vmem:[#allocation4 + $0x58] sm:$0xff]
        %v1328 = vld [vmem:[#allocation4 + $0x60] sm:$0xff]
        %v1329 = vld [vmem:[#allocation4 + $0x68] sm:$0xff]
        %v1330 = vld [vmem:[#allocation4 + $0x70] sm:$0xff]
        %v1331 = vld [vmem:[#allocation4 + $0x78] sm:$0xff]
        %v1332 = vpack.c.bf16 %v1317, %v1316
        %v1333 = vpack.c.bf16 %v1319, %v1318
        %v1334 = vpack.c.bf16 %v1321, %v1320
        %v1335 = vpack.c.bf16 %v1323, %v1322
        %v1336 = vpack.c.bf16 %v1325, %v1324
        %v1337 = vpack.c.bf16 %v1327, %v1326
        %v1338 = vpack.c.bf16 %v1329, %v1328
        %v1339 = vpack.c.bf16 %v1331, %v1330
        %s1340 = smul.u32 %s28, 16
        %s1341 = smul.addr %s1340, 4
        %s1342 = scalar_lea.vmem %s6, %s1341
        %v1343 = vld [vmem:[%s1342] sm:$0xf]
        %v1344 = vld [vmem:[%s1342 + $0x4] sm:$0xf]
        %v1345 = vld [vmem:[%s1342 + $0x8] sm:$0xf]
        %v1346 = vld [vmem:[%s1342 + $0xc] sm:$0xf]
        %v1347 = vld [vmem:[%s1342 + $0x10] sm:$0xf]
        %v1348 = vld [vmem:[%s1342 + $0x14] sm:$0xf]
        %v1349 = vld [vmem:[%s1342 + $0x18] sm:$0xf]
        %v1350 = vld [vmem:[%s1342 + $0x1c] sm:$0xf]
        %v1351 = vld [vmem:[%s1342 + $0x20] sm:$0xf]
        %v1352 = vld [vmem:[%s1342 + $0x24] sm:$0xf]
        %v1353 = vld [vmem:[%s1342 + $0x28] sm:$0xf]
        %v1354 = vld [vmem:[%s1342 + $0x2c] sm:$0xf]
        %v1355 = vld [vmem:[%s1342 + $0x30] sm:$0xf]
        %v1356 = vld [vmem:[%s1342 + $0x34] sm:$0xf]
        %v1357 = vld [vmem:[%s1342 + $0x38] sm:$0xf]
        %v1358 = vld [vmem:[%s1342 + $0x3c] sm:$0xf]
        %s1359 = scalar_lea.vmem %s7, %s28
        %v1360 = vld [vmem:[%s1359] sm:$0x1]
        %v1362 = vlaneseq
        %v1363 = vshrl.u32 %v1362, 7
        %v1364 = vsub.s32 0, %v1363
        %v1365 = vrot.slane %v1360, %v1364
        %v1383 = vunpack.c.l.b16 %v1343
        %v1384 = vunpack.c.l.b16 %v1344
        %v1385 = vunpack.c.l.b16 %v1345
        %v1386 = vunpack.c.l.b16 %v1346
        %v1387 = vunpack.c.l.b16 %v1347
        %v1388 = vunpack.c.l.b16 %v1348
        %v1389 = vunpack.c.l.b16 %v1349
        %v1390 = vunpack.c.l.b16 %v1350
        %v1391 = vunpack.c.l.b16 %v1351
        %v1392 = vunpack.c.l.b16 %v1352
        %v1393 = vunpack.c.l.b16 %v1353
        %v1394 = vunpack.c.l.b16 %v1354
        %v1395 = vunpack.c.l.b16 %v1355
        %v1396 = vunpack.c.l.b16 %v1356
        %v1397 = vunpack.c.l.b16 %v1357
        %v1398 = vunpack.c.l.b16 %v1358
        %v1399 = vpack.c.b16 %v1384, %v1383
        %v1400 = vpack.c.b16 %v1386, %v1385
        %v1401 = vpack.c.b16 %v1388, %v1387
        %v1402 = vpack.c.b16 %v1390, %v1389
        %v1403 = vpack.c.b16 %v1392, %v1391
        %v1404 = vpack.c.b16 %v1394, %v1393
        %v1405 = vpack.c.b16 %v1396, %v1395
        %v1406 = vpack.c.b16 %v1398, %v1397
        %1415 = vmatprep.subr.bf16.mxu0 0
        %1416 = vmatpush1.bf16.msra.mxu0 %v1406
        %1417 = vmatprep.subr.bf16.mxu0 0
        %1418 = vmatpush1.bf16.msra.mxu0 %v1405
        %1419 = vmatprep.subr.bf16.mxu0 0
        %1420 = vmatpush1.bf16.msra.mxu0 %v1404
        %1421 = vmatprep.subr.bf16.mxu0 0
        %1422 = vmatpush1.bf16.msra.mxu0 %v1403
        %1423 = vmatprep.subr.bf16.mxu0 0
        %1424 = vmatpush1.bf16.msra.mxu0 %v1402
        %1425 = vmatprep.subr.bf16.mxu0 0
        %1426 = vmatpush1.bf16.msra.mxu0 %v1401
        %1427 = vmatprep.subr.bf16.mxu0 0
        %1428 = vmatpush1.bf16.msra.mxu0 %v1400
        %1429 = vmatprep.subr.bf16.mxu0 0
        %1430 = vmatpush1.bf16.msra.mxu0 %v1399
        %1431 = vmatprep.subr.bf16.mxu0 0
        %1432 = vmatpush2.bf16.msra.mxu0 0
        %1433 = vmatprep.subr.bf16.mxu0 0
        %1434 = vmatpush2.bf16.msra.mxu0 0
        %1435 = vmatprep.subr.bf16.mxu0 0
        %1436 = vmatpush2.bf16.msra.mxu0 0
        %1437 = vmatprep.subr.bf16.mxu0 0
        %1438 = vmatpush2.bf16.msra.mxu0 0
        %1439 = vmatprep.subr.bf16.mxu0 0
        %1440 = vmatpush2.bf16.msra.mxu0 0
        %1441 = vmatprep.subr.bf16.mxu0 0
        %1442 = vmatpush2.bf16.msra.mxu0 0
        %1443 = vmatprep.subr.bf16.mxu0 0
        %1444 = vmatpush2.bf16.msra.mxu0 0
        %1445 = vmatprep.subr.bf16.mxu0 0
        %1446 = vmatpush2.bf16.msra.mxu0 0
        %1447 = vmatprep.mubr.bf16.mxu0 0
        %1448 = vmatmul.mubr.bf16.gmra.mxu0 %v1332
        %v1449 = vpop.f32.mrf.mxu0
        %v1450 = vadd.f32 %v1365, %v1449
        %v1451 = vpop.f32.mrf.mxu0
        %v1452 = vpop.f32.mrf.mxu0
        %v1453 = vadd.f32 %v1365, %v1452
        %v1454 = vpop.f32.mrf.mxu0
        %1455 = vmatprep.mubr.bf16.mxu0 0
        %1456 = vmatmul.mubr.bf16.gmra.mxu0 %v1333
        %v1457 = vpop.f32.mrf.mxu0
        %v1458 = vadd.f32 %v1365, %v1457
        %v1459 = vpop.f32.mrf.mxu0
        %v1460 = vpop.f32.mrf.mxu0
        %v1461 = vadd.f32 %v1365, %v1460
        %v1462 = vpop.f32.mrf.mxu0
        %1463 = vmatprep.mubr.bf16.mxu0 0
        %1464 = vmatmul.mubr.bf16.gmra.mxu0 %v1334
        %v1465 = vpop.f32.mrf.mxu0
        %v1466 = vadd.f32 %v1365, %v1465
        %v1467 = vpop.f32.mrf.mxu0
        %v1468 = vpop.f32.mrf.mxu0
        %v1469 = vadd.f32 %v1365, %v1468
        %v1470 = vpop.f32.mrf.mxu0
        %1471 = vmatprep.mubr.bf16.mxu0 0
        %1472 = vmatmul.mubr.bf16.gmra.mxu0 %v1335
        %v1473 = vpop.f32.mrf.mxu0
        %v1474 = vadd.f32 %v1365, %v1473
        %v1475 = vpop.f32.mrf.mxu0
        %v1476 = vpop.f32.mrf.mxu0
        %v1477 = vadd.f32 %v1365, %v1476
        %v1478 = vpop.f32.mrf.mxu0
        %1479 = vmatprep.mubr.bf16.mxu0 0
        %1480 = vmatmul.mubr.bf16.gmra.mxu0 %v1336
        %v1481 = vpop.f32.mrf.mxu0
        %v1482 = vadd.f32 %v1365, %v1481
        %v1483 = vpop.f32.mrf.mxu0
        %v1484 = vpop.f32.mrf.mxu0
        %v1485 = vadd.f32 %v1365, %v1484
        %v1486 = vpop.f32.mrf.mxu0
        %1487 = vmatprep.mubr.bf16.mxu0 0
        %1488 = vmatmul.mubr.bf16.gmra.mxu0 %v1337
        %v1489 = vpop.f32.mrf.mxu0
        %v1490 = vadd.f32 %v1365, %v1489
        %v1491 = vpop.f32.mrf.mxu0
        %v1492 = vpop.f32.mrf.mxu0
        %v1493 = vadd.f32 %v1365, %v1492
        %v1494 = vpop.f32.mrf.mxu0
        %1495 = vmatprep.mubr.bf16.mxu0 0
        %1496 = vmatmul.mubr.bf16.gmra.mxu0 %v1338
        %v1497 = vpop.f32.mrf.mxu0
        %v1498 = vadd.f32 %v1365, %v1497
        %v1499 = vpop.f32.mrf.mxu0
        %v1500 = vpop.f32.mrf.mxu0
        %v1501 = vadd.f32 %v1365, %v1500
        %v1502 = vpop.f32.mrf.mxu0
        %1503 = vmatprep.mubr.bf16.mxu0 0
        %1504 = vmatmul.mubr.bf16.gmra.mxu0 %v1339
        %v1505 = vpop.f32.mrf.mxu0
        %v1506 = vadd.f32 %v1365, %v1505
        %v1507 = vpop.f32.mrf.mxu0
        %v1508 = vpop.f32.mrf.mxu0
        %v1509 = vadd.f32 %v1365, %v1508
        %v1510 = vpop.f32.mrf.mxu0
        %1511 = vdwg.mxu0
        %v1512 = vmax.f32 %v1450, 0.0
        %v1513 = vmax.f32 %v1453, 0.0
        %v1514 = vmax.f32 %v1458, 0.0
        %v1515 = vmax.f32 %v1461, 0.0
        %v1516 = vmax.f32 %v1466, 0.0
        %v1517 = vmax.f32 %v1469, 0.0
        %v1518 = vmax.f32 %v1474, 0.0
        %v1519 = vmax.f32 %v1477, 0.0
        %v1520 = vmax.f32 %v1482, 0.0
        %v1521 = vmax.f32 %v1485, 0.0
        %v1522 = vmax.f32 %v1490, 0.0
        %v1523 = vmax.f32 %v1493, 0.0
        %v1524 = vmax.f32 %v1498, 0.0
        %v1525 = vmax.f32 %v1501, 0.0
        %v1526 = vmax.f32 %v1506, 0.0
        %v1527 = vmax.f32 %v1509, 0.0
        %s1528 = scalar_lea.vmem [#allocation2], %s1315
        %v1529 = vld [vmem:[%s1528] sm:$0xff]
        %v1530 = vld [vmem:[%s1528 + $0x8] sm:$0xff]
        %v1531 = vld [vmem:[%s1528 + $0x10] sm:$0xff]
        %v1532 = vld [vmem:[%s1528 + $0x18] sm:$0xff]
        %v1533 = vld [vmem:[%s1528 + $0x20] sm:$0xff]
        %v1534 = vld [vmem:[%s1528 + $0x28] sm:$0xff]
        %v1535 = vld [vmem:[%s1528 + $0x30] sm:$0xff]
        %v1536 = vld [vmem:[%s1528 + $0x38] sm:$0xff]
        %v1537 = vld [vmem:[%s1528 + $0x40] sm:$0xff]
        %v1538 = vld [vmem:[%s1528 + $0x48] sm:$0xff]
        %v1539 = vld [vmem:[%s1528 + $0x50] sm:$0xff]
        %v1540 = vld [vmem:[%s1528 + $0x58] sm:$0xff]
        %v1541 = vld [vmem:[%s1528 + $0x60] sm:$0xff]
        %v1542 = vld [vmem:[%s1528 + $0x68] sm:$0xff]
        %v1543 = vld [vmem:[%s1528 + $0x70] sm:$0xff]
        %v1544 = vld [vmem:[%s1528 + $0x78] sm:$0xff]
        %v1545 = vadd.f32 %v1529, %v1512
        %v1546 = vadd.f32 %v1530, %v1513
        %v1547 = vadd.f32 %v1531, %v1514
        %v1548 = vadd.f32 %v1532, %v1515
        %v1549 = vadd.f32 %v1533, %v1516
        %v1550 = vadd.f32 %v1534, %v1517
        %v1551 = vadd.f32 %v1535, %v1518
        %v1552 = vadd.f32 %v1536, %v1519
        %v1553 = vadd.f32 %v1537, %v1520
        %v1554 = vadd.f32 %v1538, %v1521
        %v1555 = vadd.f32 %v1539, %v1522
        %v1556 = vadd.f32 %v1540, %v1523
        %v1557 = vadd.f32 %v1541, %v1524
        %v1558 = vadd.f32 %v1542, %v1525
        %v1559 = vadd.f32 %v1543, %v1526
        %v1560 = vadd.f32 %v1544, %v1527
        %1561 = vst [vmem:[%s1528] sm:$0xff] %v1545
        %1562 = vst [vmem:[%s1528 + $0x8] sm:$0xff] %v1546
        %1563 = vst [vmem:[%s1528 + $0x10] sm:$0xff] %v1547
        %1564 = vst [vmem:[%s1528 + $0x18] sm:$0xff] %v1548
        %1565 = vst [vmem:[%s1528 + $0x20] sm:$0xff] %v1549
        %1566 = vst [vmem:[%s1528 + $0x28] sm:$0xff] %v1550
        %1567 = vst [vmem:[%s1528 + $0x30] sm:$0xff] %v1551
        %1568 = vst [vmem:[%s1528 + $0x38] sm:$0xff] %v1552
        %1569 = vst [vmem:[%s1528 + $0x40] sm:$0xff] %v1553
        %1570 = vst [vmem:[%s1528 + $0x48] sm:$0xff] %v1554
        %1571 = vst [vmem:[%s1528 + $0x50] sm:$0xff] %v1555
        %1572 = vst [vmem:[%s1528 + $0x58] sm:$0xff] %v1556
        %1573 = vst [vmem:[%s1528 + $0x60] sm:$0xff] %v1557
        %1574 = vst [vmem:[%s1528 + $0x68] sm:$0xff] %v1558
        %1575 = vst [vmem:[%s1528 + $0x70] sm:$0xff] %v1559
        %1576 = vst [vmem:[%s1528 + $0x78] sm:$0xff] %v1560
        %p1577 = scmp.lt.s32.totalorder %s28, 2
        // Predicated region
        $region81: #{simple_gnn_forward.1} parent=79 // pred_check
          %p1578 = pneg %p1577
        $region82: #{simple_gnn_forward.1} parent=79 // pred_check_branch
          %1580 = sbr.rel (%p1578) target = $region84
        $region83: #{simple_gnn_forward.1} parent=79 // pred_region
          %s1581 = sadd.s32 %s28, 1
          %p1582 = scmp.lt.s32.totalorder %s1581, 2
          %s1583 = scalar_select %p1582, %s1581, 2
          %v1584 = vpack.c.bf16 %v1546, %v1545
          %v1585 = vpack.c.bf16 %v1548, %v1547
          %v1586 = vpack.c.bf16 %v1550, %v1549
          %v1587 = vpack.c.bf16 %v1552, %v1551
          %v1588 = vpack.c.bf16 %v1554, %v1553
          %v1589 = vpack.c.bf16 %v1556, %v1555
          %v1590 = vpack.c.bf16 %v1558, %v1557
          %v1591 = vpack.c.bf16 %v1560, %v1559
          %s1592 = smul.u32 %s1583, 16
          %s1593 = smul.addr %s1592, 4
          %s1594 = scalar_lea.vmem %s4, %s1593
          %v1595 = vld [vmem:[%s1594] sm:$0xf]
          %v1596 = vld [vmem:[%s1594 + $0x4] sm:$0xf]
          %v1597 = vld [vmem:[%s1594 + $0x8] sm:$0xf]
          %v1598 = vld [vmem:[%s1594 + $0xc] sm:$0xf]
          %v1599 = vld [vmem:[%s1594 + $0x10] sm:$0xf]
          %v1600 = vld [vmem:[%s1594 + $0x14] sm:$0xf]
          %v1601 = vld [vmem:[%s1594 + $0x18] sm:$0xf]
          %v1602 = vld [vmem:[%s1594 + $0x1c] sm:$0xf]
          %v1603 = vld [vmem:[%s1594 + $0x20] sm:$0xf]
          %v1604 = vld [vmem:[%s1594 + $0x24] sm:$0xf]
          %v1605 = vld [vmem:[%s1594 + $0x28] sm:$0xf]
          %v1606 = vld [vmem:[%s1594 + $0x2c] sm:$0xf]
          %v1607 = vld [vmem:[%s1594 + $0x30] sm:$0xf]
          %v1608 = vld [vmem:[%s1594 + $0x34] sm:$0xf]
          %v1609 = vld [vmem:[%s1594 + $0x38] sm:$0xf]
          %v1610 = vld [vmem:[%s1594 + $0x3c] sm:$0xf]
          %s1611 = scalar_lea.vmem %s5, %s1583
          %v1612 = vld [vmem:[%s1611] sm:$0x1]
          %v1614 = vlaneseq
          %v1615 = vshrl.u32 %v1614, 7
          %v1616 = vsub.s32 0, %v1615
          %v1617 = vrot.slane %v1612, %v1616
          %v1635 = vunpack.c.l.b16 %v1595
          %v1636 = vunpack.c.l.b16 %v1596
          %v1637 = vunpack.c.l.b16 %v1597
          %v1638 = vunpack.c.l.b16 %v1598
          %v1639 = vunpack.c.l.b16 %v1599
          %v1640 = vunpack.c.l.b16 %v1600
          %v1641 = vunpack.c.l.b16 %v1601
          %v1642 = vunpack.c.l.b16 %v1602
          %v1643 = vunpack.c.l.b16 %v1603
          %v1644 = vunpack.c.l.b16 %v1604
          %v1645 = vunpack.c.l.b16 %v1605
          %v1646 = vunpack.c.l.b16 %v1606
          %v1647 = vunpack.c.l.b16 %v1607
          %v1648 = vunpack.c.l.b16 %v1608
          %v1649 = vunpack.c.l.b16 %v1609
          %v1650 = vunpack.c.l.b16 %v1610
          %v1651 = vpack.c.b16 %v1636, %v1635
          %v1652 = vpack.c.b16 %v1638, %v1637
          %v1653 = vpack.c.b16 %v1640, %v1639
          %v1654 = vpack.c.b16 %v1642, %v1641
          %v1655 = vpack.c.b16 %v1644, %v1643
          %v1656 = vpack.c.b16 %v1646, %v1645
          %v1657 = vpack.c.b16 %v1648, %v1647
          %v1658 = vpack.c.b16 %v1650, %v1649
          %1667 = vmatprep.subr.bf16.mxu0 0
          %1668 = vmatpush1.bf16.msra.mxu0 %v1658
          %1669 = vmatprep.subr.bf16.mxu0 0
          %1670 = vmatpush1.bf16.msra.mxu0 %v1657
          %1671 = vmatprep.subr.bf16.mxu0 0
          %1672 = vmatpush1.bf16.msra.mxu0 %v1656
          %1673 = vmatprep.subr.bf16.mxu0 0
          %1674 = vmatpush1.bf16.msra.mxu0 %v1655
          %1675 = vmatprep.subr.bf16.mxu0 0
          %1676 = vmatpush1.bf16.msra.mxu0 %v1654
          %1677 = vmatprep.subr.bf16.mxu0 0
          %1678 = vmatpush1.bf16.msra.mxu0 %v1653
          %1679 = vmatprep.subr.bf16.mxu0 0
          %1680 = vmatpush1.bf16.msra.mxu0 %v1652
          %1681 = vmatprep.subr.bf16.mxu0 0
          %1682 = vmatpush1.bf16.msra.mxu0 %v1651
          %1683 = vmatprep.subr.bf16.mxu0 0
          %1684 = vmatpush2.bf16.msra.mxu0 0
          %1685 = vmatprep.subr.bf16.mxu0 0
          %1686 = vmatpush2.bf16.msra.mxu0 0
          %1687 = vmatprep.subr.bf16.mxu0 0
          %1688 = vmatpush2.bf16.msra.mxu0 0
          %1689 = vmatprep.subr.bf16.mxu0 0
          %1690 = vmatpush2.bf16.msra.mxu0 0
          %1691 = vmatprep.subr.bf16.mxu0 0
          %1692 = vmatpush2.bf16.msra.mxu0 0
          %1693 = vmatprep.subr.bf16.mxu0 0
          %1694 = vmatpush2.bf16.msra.mxu0 0
          %1695 = vmatprep.subr.bf16.mxu0 0
          %1696 = vmatpush2.bf16.msra.mxu0 0
          %1697 = vmatprep.subr.bf16.mxu0 0
          %1698 = vmatpush2.bf16.msra.mxu0 0
          %1699 = vmatprep.mubr.bf16.mxu0 0
          %1700 = vmatmul.mubr.bf16.gmra.mxu0 %v1584
          %v1701 = vpop.f32.mrf.mxu0
          %v1702 = vadd.f32 %v1617, %v1701
          %v1703 = vpop.f32.mrf.mxu0
          %v1704 = vpop.f32.mrf.mxu0
          %v1705 = vadd.f32 %v1617, %v1704
          %v1706 = vpop.f32.mrf.mxu0
          %1707 = vmatprep.mubr.bf16.mxu0 0
          %1708 = vmatmul.mubr.bf16.gmra.mxu0 %v1585
          %v1709 = vpop.f32.mrf.mxu0
          %v1710 = vadd.f32 %v1617, %v1709
          %v1711 = vpop.f32.mrf.mxu0
          %v1712 = vpop.f32.mrf.mxu0
          %v1713 = vadd.f32 %v1617, %v1712
          %v1714 = vpop.f32.mrf.mxu0
          %1715 = vmatprep.mubr.bf16.mxu0 0
          %1716 = vmatmul.mubr.bf16.gmra.mxu0 %v1586
          %v1717 = vpop.f32.mrf.mxu0
          %v1718 = vadd.f32 %v1617, %v1717
          %v1719 = vpop.f32.mrf.mxu0
          %v1720 = vpop.f32.mrf.mxu0
          %v1721 = vadd.f32 %v1617, %v1720
          %v1722 = vpop.f32.mrf.mxu0
          %1723 = vmatprep.mubr.bf16.mxu0 0
          %1724 = vmatmul.mubr.bf16.gmra.mxu0 %v1587
          %v1725 = vpop.f32.mrf.mxu0
          %v1726 = vadd.f32 %v1617, %v1725
          %v1727 = vpop.f32.mrf.mxu0
          %v1728 = vpop.f32.mrf.mxu0
          %v1729 = vadd.f32 %v1617, %v1728
          %v1730 = vpop.f32.mrf.mxu0
          %1731 = vmatprep.mubr.bf16.mxu0 0
          %1732 = vmatmul.mubr.bf16.gmra.mxu0 %v1588
          %v1733 = vpop.f32.mrf.mxu0
          %v1734 = vadd.f32 %v1617, %v1733
          %v1735 = vpop.f32.mrf.mxu0
          %v1736 = vpop.f32.mrf.mxu0
          %v1737 = vadd.f32 %v1617, %v1736
          %v1738 = vpop.f32.mrf.mxu0
          %1739 = vmatprep.mubr.bf16.mxu0 0
          %1740 = vmatmul.mubr.bf16.gmra.mxu0 %v1589
          %v1741 = vpop.f32.mrf.mxu0
          %v1742 = vadd.f32 %v1617, %v1741
          %v1743 = vpop.f32.mrf.mxu0
          %v1744 = vpop.f32.mrf.mxu0
          %v1745 = vadd.f32 %v1617, %v1744
          %v1746 = vpop.f32.mrf.mxu0
          %1747 = vmatprep.mubr.bf16.mxu0 0
          %1748 = vmatmul.mubr.bf16.gmra.mxu0 %v1590
          %v1749 = vpop.f32.mrf.mxu0
          %v1750 = vadd.f32 %v1617, %v1749
          %v1751 = vpop.f32.mrf.mxu0
          %v1752 = vpop.f32.mrf.mxu0
          %v1753 = vadd.f32 %v1617, %v1752
          %v1754 = vpop.f32.mrf.mxu0
          %1755 = vmatprep.mubr.bf16.mxu0 0
          %1756 = vmatmul.mubr.bf16.gmra.mxu0 %v1591
          %v1757 = vpop.f32.mrf.mxu0
          %v1758 = vadd.f32 %v1617, %v1757
          %v1759 = vpop.f32.mrf.mxu0
          %v1760 = vpop.f32.mrf.mxu0
          %v1761 = vadd.f32 %v1617, %v1760
          %v1762 = vpop.f32.mrf.mxu0
          %1763 = vdwg.mxu0
          %v1764 = vmax.f32 %v1702, 0.0
          %v1765 = vmax.f32 %v1705, 0.0
          %v1766 = vmax.f32 %v1710, 0.0
          %v1767 = vmax.f32 %v1713, 0.0
          %v1768 = vmax.f32 %v1718, 0.0
          %v1769 = vmax.f32 %v1721, 0.0
          %v1770 = vmax.f32 %v1726, 0.0
          %v1771 = vmax.f32 %v1729, 0.0
          %v1772 = vmax.f32 %v1734, 0.0
          %v1773 = vmax.f32 %v1737, 0.0
          %v1774 = vmax.f32 %v1742, 0.0
          %v1775 = vmax.f32 %v1745, 0.0
          %v1776 = vmax.f32 %v1750, 0.0
          %v1777 = vmax.f32 %v1753, 0.0
          %v1778 = vmax.f32 %v1758, 0.0
          %v1779 = vmax.f32 %v1761, 0.0
          %v1780 = vpack.c.bf16 %v1765, %v1764
          %v1781 = vpack.c.bf16 %v1767, %v1766
          %v1782 = vpack.c.bf16 %v1769, %v1768
          %v1783 = vpack.c.bf16 %v1771, %v1770
          %v1784 = vpack.c.bf16 %v1773, %v1772
          %v1785 = vpack.c.bf16 %v1775, %v1774
          %v1786 = vpack.c.bf16 %v1777, %v1776
          %v1787 = vpack.c.bf16 %v1779, %v1778
          %p1788 = scmp.lt.s32.totalorder %s1581, 0
          %s1789 = ssub.s32 0, %s1581
          %s1790 = scalar_select %p1788, %s1789, %s1581
          %s1791 = sand.u32 %s1790, 1
          %s1792 = ssub.s32 0, %s1791
          %s1793 = scalar_select %p1788, %s1792, %s1791
          %p1794 = scmp.ne.s32.totalorder %s1793, 0
          %p1795 = scmp.lt.s32.totalorder %s1793, 0
          %p1796 = pnand %p1795, %p1794
          %p1797 = pneg %p1796
          %s1798 = sadd.s32 %s1793, 2
          %s1799 = scalar_select %p1797, %s1798, %s1793
          %s1800 = sadd.s32 %s1799, %s29
          %v1809 = vunpack.c.l.b16 %v1780
          %v1810 = vunpack.c.h.b16 %v1780
          %v1811 = vunpack.c.l.b16 %v1781
          %v1812 = vunpack.c.h.b16 %v1781
          %v1813 = vunpack.c.l.b16 %v1782
          %v1814 = vunpack.c.h.b16 %v1782
          %v1815 = vunpack.c.l.b16 %v1783
          %v1816 = vunpack.c.h.b16 %v1783
          %v1817 = vunpack.c.l.b16 %v1784
          %v1818 = vunpack.c.h.b16 %v1784
          %v1819 = vunpack.c.l.b16 %v1785
          %v1820 = vunpack.c.h.b16 %v1785
          %v1821 = vunpack.c.l.b16 %v1786
          %v1822 = vunpack.c.h.b16 %v1786
          %v1823 = vunpack.c.l.b16 %v1787
          %v1824 = vunpack.c.h.b16 %v1787
          %v1825 = vpack.c.b16 %v1809, %v1809
          %v1826 = vpack.c.b16 %v1810, %v1810
          %v1827 = vpack.c.b16 %v1811, %v1811
          %v1828 = vpack.c.b16 %v1812, %v1812
          %v1829 = vpack.c.b16 %v1813, %v1813
          %v1830 = vpack.c.b16 %v1814, %v1814
          %v1831 = vpack.c.b16 %v1815, %v1815
          %v1832 = vpack.c.b16 %v1816, %v1816
          %v1833 = vpack.c.b16 %v1817, %v1817
          %v1834 = vpack.c.b16 %v1818, %v1818
          %v1835 = vpack.c.b16 %v1819, %v1819
          %v1836 = vpack.c.b16 %v1820, %v1820
          %v1837 = vpack.c.b16 %v1821, %v1821
          %v1838 = vpack.c.b16 %v1822, %v1822
          %v1839 = vpack.c.b16 %v1823, %v1823
          %v1840 = vpack.c.b16 %v1824, %v1824
          %s1857 = smul.u32 %s1800, 16
          %s1858 = smul.addr %s1857, 4
          %s1859 = scalar_lea.vmem [#allocation3], %s1858
          %1860 = vst [vmem:[%s1859] sm:$0xf] %v1825
          %1861 = vst [vmem:[%s1859 + $0x4] sm:$0xf] %v1826
          %1862 = vst [vmem:[%s1859 + $0x8] sm:$0xf] %v1827
          %1863 = vst [vmem:[%s1859 + $0xc] sm:$0xf] %v1828
          %1864 = vst [vmem:[%s1859 + $0x10] sm:$0xf] %v1829
          %1865 = vst [vmem:[%s1859 + $0x14] sm:$0xf] %v1830
          %1866 = vst [vmem:[%s1859 + $0x18] sm:$0xf] %v1831
          %1867 = vst [vmem:[%s1859 + $0x1c] sm:$0xf] %v1832
          %1868 = vst [vmem:[%s1859 + $0x20] sm:$0xf] %v1833
          %1869 = vst [vmem:[%s1859 + $0x24] sm:$0xf] %v1834
          %1870 = vst [vmem:[%s1859 + $0x28] sm:$0xf] %v1835
          %1871 = vst [vmem:[%s1859 + $0x2c] sm:$0xf] %v1836
          %1872 = vst [vmem:[%s1859 + $0x30] sm:$0xf] %v1837
          %1873 = vst [vmem:[%s1859 + $0x34] sm:$0xf] %v1838
          %1874 = vst [vmem:[%s1859 + $0x38] sm:$0xf] %v1839
          %1875 = vst [vmem:[%s1859 + $0x3c] sm:$0xf] %v1840
        $region84: #{simple_gnn_forward.1} parent=79 // pred_fallthru
          _
        %p1876 = scmp.eq.s32.totalorder %s28, 2
        // Predicated region
        $region85: #{simple_gnn_forward.1} parent=79 // pred_check
          %p1877 = pneg %p1876
        $region86: #{simple_gnn_forward.1} parent=79 // pred_check_branch
          %1879 = sbr.rel (%p1877) target = $region88
        $region87: #{simple_gnn_forward.1} parent=79 // pred_region
          %v1880 = vpack.c.bf16 %v1546, %v1545
          %v1881 = vpack.c.bf16 %v1548, %v1547
          %v1882 = vpack.c.bf16 %v1550, %v1549
          %v1883 = vpack.c.bf16 %v1552, %v1551
          %v1884 = vpack.c.bf16 %v1554, %v1553
          %v1885 = vpack.c.bf16 %v1556, %v1555
          %v1886 = vpack.c.bf16 %v1558, %v1557
          %v1887 = vpack.c.bf16 %v1560, %v1559
          %v1888 = vld [vmem:[%s8] sm:$0xf]
          %v1889 = vld [vmem:[%s8 + $0x4] sm:$0xf]
          %v1890 = vld [vmem:[%s8 + $0x8] sm:$0xf]
          %v1891 = vld [vmem:[%s8 + $0xc] sm:$0xf]
          %v1892 = vld [vmem:[%s8 + $0x10] sm:$0xf]
          %v1893 = vld [vmem:[%s8 + $0x14] sm:$0xf]
          %v1894 = vld [vmem:[%s8 + $0x18] sm:$0xf]
          %v1895 = vld [vmem:[%s8 + $0x1c] sm:$0xf]
          %v1896 = vld [vmem:[%s8 + $0x20] sm:$0xf]
          %v1897 = vld [vmem:[%s8 + $0x24] sm:$0xf]
          %v1898 = vld [vmem:[%s8 + $0x28] sm:$0xf]
          %v1899 = vld [vmem:[%s8 + $0x2c] sm:$0xf]
          %v1900 = vld [vmem:[%s8 + $0x30] sm:$0xf]
          %v1901 = vld [vmem:[%s8 + $0x34] sm:$0xf]
          %v1902 = vld [vmem:[%s8 + $0x38] sm:$0xf]
          %v1903 = vld [vmem:[%s8 + $0x3c] sm:$0xf]
          %v1904 = vld [vmem:[%s9] sm:$0x1]
          %v1906 = vlaneseq
          %v1907 = vshrl.u32 %v1906, 7
          %v1908 = vsub.s32 0, %v1907
          %v1909 = vrot.slane %v1904, %v1908
          %v1927 = vunpack.c.l.b16 %v1888
          %v1928 = vunpack.c.l.b16 %v1889
          %v1929 = vunpack.c.l.b16 %v1890
          %v1930 = vunpack.c.l.b16 %v1891
          %v1931 = vunpack.c.l.b16 %v1892
          %v1932 = vunpack.c.l.b16 %v1893
          %v1933 = vunpack.c.l.b16 %v1894
          %v1934 = vunpack.c.l.b16 %v1895
          %v1935 = vunpack.c.l.b16 %v1896
          %v1936 = vunpack.c.l.b16 %v1897
          %v1937 = vunpack.c.l.b16 %v1898
          %v1938 = vunpack.c.l.b16 %v1899
          %v1939 = vunpack.c.l.b16 %v1900
          %v1940 = vunpack.c.l.b16 %v1901
          %v1941 = vunpack.c.l.b16 %v1902
          %v1942 = vunpack.c.l.b16 %v1903
          %v1943 = vpack.c.b16 %v1928, %v1927
          %v1944 = vpack.c.b16 %v1930, %v1929
          %v1945 = vpack.c.b16 %v1932, %v1931
          %v1946 = vpack.c.b16 %v1934, %v1933
          %v1947 = vpack.c.b16 %v1936, %v1935
          %v1948 = vpack.c.b16 %v1938, %v1937
          %v1949 = vpack.c.b16 %v1940, %v1939
          %v1950 = vpack.c.b16 %v1942, %v1941
          %1959 = vmatprep.subr.bf16.mxu0 0
          %1960 = vmatpush1.bf16.msra.mxu0 %v1950
          %1961 = vmatprep.subr.bf16.mxu0 0
          %1962 = vmatpush1.bf16.msra.mxu0 %v1949
          %1963 = vmatprep.subr.bf16.mxu0 0
          %1964 = vmatpush1.bf16.msra.mxu0 %v1948
          %1965 = vmatprep.subr.bf16.mxu0 0
          %1966 = vmatpush1.bf16.msra.mxu0 %v1947
          %1967 = vmatprep.subr.bf16.mxu0 0
          %1968 = vmatpush1.bf16.msra.mxu0 %v1946
          %1969 = vmatprep.subr.bf16.mxu0 0
          %1970 = vmatpush1.bf16.msra.mxu0 %v1945
          %1971 = vmatprep.subr.bf16.mxu0 0
          %1972 = vmatpush1.bf16.msra.mxu0 %v1944
          %1973 = vmatprep.subr.bf16.mxu0 0
          %1974 = vmatpush1.bf16.msra.mxu0 %v1943
          %1975 = vmatprep.subr.bf16.mxu0 0
          %1976 = vmatpush2.bf16.msra.mxu0 0
          %1977 = vmatprep.subr.bf16.mxu0 0
          %1978 = vmatpush2.bf16.msra.mxu0 0
          %1979 = vmatprep.subr.bf16.mxu0 0
          %1980 = vmatpush2.bf16.msra.mxu0 0
          %1981 = vmatprep.subr.bf16.mxu0 0
          %1982 = vmatpush2.bf16.msra.mxu0 0
          %1983 = vmatprep.subr.bf16.mxu0 0
          %1984 = vmatpush2.bf16.msra.mxu0 0
          %1985 = vmatprep.subr.bf16.mxu0 0
          %1986 = vmatpush2.bf16.msra.mxu0 0
          %1987 = vmatprep.subr.bf16.mxu0 0
          %1988 = vmatpush2.bf16.msra.mxu0 0
          %1989 = vmatprep.subr.bf16.mxu0 0
          %1990 = vmatpush2.bf16.msra.mxu0 0
          %1991 = vmatprep.mubr.bf16.mxu0 0
          %1992 = vmatmul.mubr.bf16.gmra.mxu0 %v1880
          %v1993 = vpop.f32.mrf.mxu0
          %v1994 = vadd.f32 %v1909, %v1993
          %v1995 = vpop.f32.mrf.mxu0
          %v1996 = vpop.f32.mrf.mxu0
          %v1997 = vadd.f32 %v1909, %v1996
          %v1998 = vpop.f32.mrf.mxu0
          %1999 = vmatprep.mubr.bf16.mxu0 0
          %2000 = vmatmul.mubr.bf16.gmra.mxu0 %v1881
          %v2001 = vpop.f32.mrf.mxu0
          %v2002 = vadd.f32 %v1909, %v2001
          %v2003 = vpop.f32.mrf.mxu0
          %v2004 = vpop.f32.mrf.mxu0
          %v2005 = vadd.f32 %v1909, %v2004
          %v2006 = vpop.f32.mrf.mxu0
          %2007 = vmatprep.mubr.bf16.mxu0 0
          %2008 = vmatmul.mubr.bf16.gmra.mxu0 %v1882
          %v2009 = vpop.f32.mrf.mxu0
          %v2010 = vadd.f32 %v1909, %v2009
          %v2011 = vpop.f32.mrf.mxu0
          %v2012 = vpop.f32.mrf.mxu0
          %v2013 = vadd.f32 %v1909, %v2012
          %v2014 = vpop.f32.mrf.mxu0
          %2015 = vmatprep.mubr.bf16.mxu0 0
          %2016 = vmatmul.mubr.bf16.gmra.mxu0 %v1883
          %v2017 = vpop.f32.mrf.mxu0
          %v2018 = vadd.f32 %v1909, %v2017
          %v2019 = vpop.f32.mrf.mxu0
          %v2020 = vpop.f32.mrf.mxu0
          %v2021 = vadd.f32 %v1909, %v2020
          %v2022 = vpop.f32.mrf.mxu0
          %2023 = vmatprep.mubr.bf16.mxu0 0
          %2024 = vmatmul.mubr.bf16.gmra.mxu0 %v1884
          %v2025 = vpop.f32.mrf.mxu0
          %v2026 = vadd.f32 %v1909, %v2025
          %v2027 = vpop.f32.mrf.mxu0
          %v2028 = vpop.f32.mrf.mxu0
          %v2029 = vadd.f32 %v1909, %v2028
          %v2030 = vpop.f32.mrf.mxu0
          %2031 = vmatprep.mubr.bf16.mxu0 0
          %2032 = vmatmul.mubr.bf16.gmra.mxu0 %v1885
          %v2033 = vpop.f32.mrf.mxu0
          %v2034 = vadd.f32 %v1909, %v2033
          %v2035 = vpop.f32.mrf.mxu0
          %v2036 = vpop.f32.mrf.mxu0
          %v2037 = vadd.f32 %v1909, %v2036
          %v2038 = vpop.f32.mrf.mxu0
          %2039 = vmatprep.mubr.bf16.mxu0 0
          %2040 = vmatmul.mubr.bf16.gmra.mxu0 %v1886
          %v2041 = vpop.f32.mrf.mxu0
          %v2042 = vadd.f32 %v1909, %v2041
          %v2043 = vpop.f32.mrf.mxu0
          %v2044 = vpop.f32.mrf.mxu0
          %v2045 = vadd.f32 %v1909, %v2044
          %v2046 = vpop.f32.mrf.mxu0
          %2047 = vmatprep.mubr.bf16.mxu0 0
          %2048 = vmatmul.mubr.bf16.gmra.mxu0 %v1887
          %v2049 = vpop.f32.mrf.mxu0
          %v2050 = vadd.f32 %v1909, %v2049
          %v2051 = vpop.f32.mrf.mxu0
          %v2052 = vpop.f32.mrf.mxu0
          %v2053 = vadd.f32 %v1909, %v2052
          %v2054 = vpop.f32.mrf.mxu0
          %2055 = vdwg.mxu0
          %v2056 = vmax.f32 %v1994, 0.0
          %v2057 = vmax.f32 %v1997, 0.0
          %v2058 = vmax.f32 %v2002, 0.0
          %v2059 = vmax.f32 %v2005, 0.0
          %v2060 = vmax.f32 %v2010, 0.0
          %v2061 = vmax.f32 %v2013, 0.0
          %v2062 = vmax.f32 %v2018, 0.0
          %v2063 = vmax.f32 %v2021, 0.0
          %v2064 = vmax.f32 %v2026, 0.0
          %v2065 = vmax.f32 %v2029, 0.0
          %v2066 = vmax.f32 %v2034, 0.0
          %v2067 = vmax.f32 %v2037, 0.0
          %v2068 = vmax.f32 %v2042, 0.0
          %v2069 = vmax.f32 %v2045, 0.0
          %v2070 = vmax.f32 %v2050, 0.0
          %v2071 = vmax.f32 %v2053, 0.0
          %v2072 = vpack.c.bf16 %v2057, %v2056
          %v2073 = vpack.c.bf16 %v2059, %v2058
          %v2074 = vpack.c.bf16 %v2061, %v2060
          %v2075 = vpack.c.bf16 %v2063, %v2062
          %v2076 = vpack.c.bf16 %v2065, %v2064
          %v2077 = vpack.c.bf16 %v2067, %v2066
          %v2078 = vpack.c.bf16 %v2069, %v2068
          %v2079 = vpack.c.bf16 %v2071, %v2070
          %v2080 = vld [vmem:[%s10] sm:$0xf]
          %v2081 = vld [vmem:[%s10 + $0x4] sm:$0xf]
          %v2082 = vld [vmem:[%s10 + $0x8] sm:$0xf]
          %v2083 = vld [vmem:[%s10 + $0xc] sm:$0xf]
          %v2084 = vld [vmem:[%s10 + $0x10] sm:$0xf]
          %v2085 = vld [vmem:[%s10 + $0x14] sm:$0xf]
          %v2086 = vld [vmem:[%s10 + $0x18] sm:$0xf]
          %v2087 = vld [vmem:[%s10 + $0x1c] sm:$0xf]
          %v2088 = vld [vmem:[%s10 + $0x20] sm:$0xf]
          %v2089 = vld [vmem:[%s10 + $0x24] sm:$0xf]
          %v2090 = vld [vmem:[%s10 + $0x28] sm:$0xf]
          %v2091 = vld [vmem:[%s10 + $0x2c] sm:$0xf]
          %v2092 = vld [vmem:[%s10 + $0x30] sm:$0xf]
          %v2093 = vld [vmem:[%s10 + $0x34] sm:$0xf]
          %v2094 = vld [vmem:[%s10 + $0x38] sm:$0xf]
          %v2095 = vld [vmem:[%s10 + $0x3c] sm:$0xf]
          %v2096 = vld [vmem:[%s11] sm:$0x1]
          %v2098 = vlaneseq
          %v2099 = vshrl.u32 %v2098, 7
          %v2100 = vsub.s32 0, %v2099
          %v2101 = vrot.slane %v2096, %v2100
          %v2119 = vunpack.c.l.b16 %v2080
          %v2120 = vunpack.c.l.b16 %v2081
          %v2121 = vunpack.c.l.b16 %v2082
          %v2122 = vunpack.c.l.b16 %v2083
          %v2123 = vunpack.c.l.b16 %v2084
          %v2124 = vunpack.c.l.b16 %v2085
          %v2125 = vunpack.c.l.b16 %v2086
          %v2126 = vunpack.c.l.b16 %v2087
          %v2127 = vunpack.c.l.b16 %v2088
          %v2128 = vunpack.c.l.b16 %v2089
          %v2129 = vunpack.c.l.b16 %v2090
          %v2130 = vunpack.c.l.b16 %v2091
          %v2131 = vunpack.c.l.b16 %v2092
          %v2132 = vunpack.c.l.b16 %v2093
          %v2133 = vunpack.c.l.b16 %v2094
          %v2134 = vunpack.c.l.b16 %v2095
          %v2135 = vpack.c.b16 %v2120, %v2119
          %v2136 = vpack.c.b16 %v2122, %v2121
          %v2137 = vpack.c.b16 %v2124, %v2123
          %v2138 = vpack.c.b16 %v2126, %v2125
          %v2139 = vpack.c.b16 %v2128, %v2127
          %v2140 = vpack.c.b16 %v2130, %v2129
          %v2141 = vpack.c.b16 %v2132, %v2131
          %v2142 = vpack.c.b16 %v2134, %v2133
          %2151 = vmatprep.subr.bf16.mxu0 0
          %2152 = vmatpush1.bf16.msra.mxu0 %v2142
          %2153 = vmatprep.subr.bf16.mxu0 0
          %2154 = vmatpush1.bf16.msra.mxu0 %v2141
          %2155 = vmatprep.subr.bf16.mxu0 0
          %2156 = vmatpush1.bf16.msra.mxu0 %v2140
          %2157 = vmatprep.subr.bf16.mxu0 0
          %2158 = vmatpush1.bf16.msra.mxu0 %v2139
          %2159 = vmatprep.subr.bf16.mxu0 0
          %2160 = vmatpush1.bf16.msra.mxu0 %v2138
          %2161 = vmatprep.subr.bf16.mxu0 0
          %2162 = vmatpush1.bf16.msra.mxu0 %v2137
          %2163 = vmatprep.subr.bf16.mxu0 0
          %2164 = vmatpush1.bf16.msra.mxu0 %v2136
          %2165 = vmatprep.subr.bf16.mxu0 0
          %2166 = vmatpush1.bf16.msra.mxu0 %v2135
          %2167 = vmatprep.subr.bf16.mxu0 0
          %2168 = vmatpush2.bf16.msra.mxu0 0
          %2169 = vmatprep.subr.bf16.mxu0 0
          %2170 = vmatpush2.bf16.msra.mxu0 0
          %2171 = vmatprep.subr.bf16.mxu0 0
          %2172 = vmatpush2.bf16.msra.mxu0 0
          %2173 = vmatprep.subr.bf16.mxu0 0
          %2174 = vmatpush2.bf16.msra.mxu0 0
          %2175 = vmatprep.subr.bf16.mxu0 0
          %2176 = vmatpush2.bf16.msra.mxu0 0
          %2177 = vmatprep.subr.bf16.mxu0 0
          %2178 = vmatpush2.bf16.msra.mxu0 0
          %2179 = vmatprep.subr.bf16.mxu0 0
          %2180 = vmatpush2.bf16.msra.mxu0 0
          %2181 = vmatprep.subr.bf16.mxu0 0
          %2182 = vmatpush2.bf16.msra.mxu0 0
          %2183 = vmatprep.mubr.bf16.mxu0 0
          %2184 = vmatmul.mubr.bf16.gmra.mxu0 %v2072
          %v2185 = vpop.f32.mrf.mxu0
          %v2186 = vadd.f32 %v2101, %v2185
          %v2187 = vpop.f32.mrf.mxu0
          %v2188 = vpop.f32.mrf.mxu0
          %v2189 = vadd.f32 %v2101, %v2188
          %v2190 = vpop.f32.mrf.mxu0
          %2191 = vmatprep.mubr.bf16.mxu0 0
          %2192 = vmatmul.mubr.bf16.gmra.mxu0 %v2073
          %v2193 = vpop.f32.mrf.mxu0
          %v2194 = vadd.f32 %v2101, %v2193
          %v2195 = vpop.f32.mrf.mxu0
          %v2196 = vpop.f32.mrf.mxu0
          %v2197 = vadd.f32 %v2101, %v2196
          %v2198 = vpop.f32.mrf.mxu0
          %2199 = vmatprep.mubr.bf16.mxu0 0
          %2200 = vmatmul.mubr.bf16.gmra.mxu0 %v2074
          %v2201 = vpop.f32.mrf.mxu0
          %v2202 = vadd.f32 %v2101, %v2201
          %v2203 = vpop.f32.mrf.mxu0
          %v2204 = vpop.f32.mrf.mxu0
          %v2205 = vadd.f32 %v2101, %v2204
          %v2206 = vpop.f32.mrf.mxu0
          %2207 = vmatprep.mubr.bf16.mxu0 0
          %2208 = vmatmul.mubr.bf16.gmra.mxu0 %v2075
          %v2209 = vpop.f32.mrf.mxu0
          %v2210 = vadd.f32 %v2101, %v2209
          %v2211 = vpop.f32.mrf.mxu0
          %v2212 = vpop.f32.mrf.mxu0
          %v2213 = vadd.f32 %v2101, %v2212
          %v2214 = vpop.f32.mrf.mxu0
          %2215 = vmatprep.mubr.bf16.mxu0 0
          %2216 = vmatmul.mubr.bf16.gmra.mxu0 %v2076
          %v2217 = vpop.f32.mrf.mxu0
          %v2218 = vadd.f32 %v2101, %v2217
          %v2219 = vpop.f32.mrf.mxu0
          %v2220 = vpop.f32.mrf.mxu0
          %v2221 = vadd.f32 %v2101, %v2220
          %v2222 = vpop.f32.mrf.mxu0
          %2223 = vmatprep.mubr.bf16.mxu0 0
          %2224 = vmatmul.mubr.bf16.gmra.mxu0 %v2077
          %v2225 = vpop.f32.mrf.mxu0
          %v2226 = vadd.f32 %v2101, %v2225
          %v2227 = vpop.f32.mrf.mxu0
          %v2228 = vpop.f32.mrf.mxu0
          %v2229 = vadd.f32 %v2101, %v2228
          %v2230 = vpop.f32.mrf.mxu0
          %2231 = vmatprep.mubr.bf16.mxu0 0
          %2232 = vmatmul.mubr.bf16.gmra.mxu0 %v2078
          %v2233 = vpop.f32.mrf.mxu0
          %v2234 = vadd.f32 %v2101, %v2233
          %v2235 = vpop.f32.mrf.mxu0
          %v2236 = vpop.f32.mrf.mxu0
          %v2237 = vadd.f32 %v2101, %v2236
          %v2238 = vpop.f32.mrf.mxu0
          %2239 = vmatprep.mubr.bf16.mxu0 0
          %2240 = vmatmul.mubr.bf16.gmra.mxu0 %v2079
          %v2241 = vpop.f32.mrf.mxu0
          %v2242 = vadd.f32 %v2101, %v2241
          %v2243 = vpop.f32.mrf.mxu0
          %v2244 = vpop.f32.mrf.mxu0
          %v2245 = vadd.f32 %v2101, %v2244
          %v2246 = vpop.f32.mrf.mxu0
          %2247 = vdwg.mxu0
          %v2248 = vlaneseq
          %v2249 = vand.u32 %v2248, 127
          %vm2250 = vcmp.ge.s32.totalorder %v2249, 1
          %v2251 = vmul.f32 %v2186, 1.442695
          %v2252 = vpow.pop %v2251
          %v2253 = vmul.f32 %v2189, 1.442695
          %v2254 = vpow.pop %v2253
          %v2255 = vmul.f32 %v2194, 1.442695
          %v2256 = vpow.pop %v2255
          %v2257 = vmul.f32 %v2197, 1.442695
          %v2258 = vpow.pop %v2257
          %v2259 = vmul.f32 %v2202, 1.442695
          %v2260 = vpow.pop %v2259
          %v2261 = vmul.f32 %v2205, 1.442695
          %v2262 = vpow.pop %v2261
          %v2263 = vmul.f32 %v2210, 1.442695
          %v2264 = vpow.pop %v2263
          %v2265 = vmul.f32 %v2213, 1.442695
          %v2266 = vpow.pop %v2265
          %v2267 = vmul.f32 %v2218, 1.442695
          %v2268 = vpow.pop %v2267
          %v2269 = vmul.f32 %v2221, 1.442695
          %v2270 = vpow.pop %v2269
          %v2271 = vmul.f32 %v2226, 1.442695
          %v2272 = vpow.pop %v2271
          %v2273 = vmul.f32 %v2229, 1.442695
          %v2274 = vpow.pop %v2273
          %v2275 = vmul.f32 %v2234, 1.442695
          %v2276 = vpow.pop %v2275
          %v2277 = vmul.f32 %v2237, 1.442695
          %v2278 = vpow.pop %v2277
          %v2279 = vmul.f32 %v2242, 1.442695
          %v2280 = vpow.pop %v2279
          %v2281 = vmul.f32 %v2245, 1.442695
          %v2282 = vpow.pop %v2281
          %v2283 = vsel %vm2250, %v2252, %v2186
          %v2284 = vsel %vm2250, %v2254, %v2189
          %v2285 = vsel %vm2250, %v2256, %v2194
          %v2286 = vsel %vm2250, %v2258, %v2197
          %v2287 = vsel %vm2250, %v2260, %v2202
          %v2288 = vsel %vm2250, %v2262, %v2205
          %v2289 = vsel %vm2250, %v2264, %v2210
          %v2290 = vsel %vm2250, %v2266, %v2213
          %v2291 = vsel %vm2250, %v2268, %v2218
          %v2292 = vsel %vm2250, %v2270, %v2221
          %v2293 = vsel %vm2250, %v2272, %v2226
          %v2294 = vsel %vm2250, %v2274, %v2229
          %v2295 = vsel %vm2250, %v2276, %v2234
          %v2296 = vsel %vm2250, %v2278, %v2237
          %v2297 = vsel %vm2250, %v2280, %v2242
          %v2298 = vsel %vm2250, %v2282, %v2245
          %2299 = vst [vmem:[%s454] sm:$0xff] %v2283
          %2300 = vst [vmem:[%s454 + $0x8] sm:$0xff] %v2284
          %2301 = vst [vmem:[%s454 + $0x10] sm:$0xff] %v2285
          %2302 = vst [vmem:[%s454 + $0x18] sm:$0xff] %v2286
          %2303 = vst [vmem:[%s454 + $0x20] sm:$0xff] %v2287
          %2304 = vst [vmem:[%s454 + $0x28] sm:$0xff] %v2288
          %2305 = vst [vmem:[%s454 + $0x30] sm:$0xff] %v2289
          %2306 = vst [vmem:[%s454 + $0x38] sm:$0xff] %v2290
          %2307 = vst [vmem:[%s454 + $0x40] sm:$0xff] %v2291
          %2308 = vst [vmem:[%s454 + $0x48] sm:$0xff] %v2292
          %2309 = vst [vmem:[%s454 + $0x50] sm:$0xff] %v2293
          %2310 = vst [vmem:[%s454 + $0x58] sm:$0xff] %v2294
          %2311 = vst [vmem:[%s454 + $0x60] sm:$0xff] %v2295
          %2312 = vst [vmem:[%s454 + $0x68] sm:$0xff] %v2296
          %2313 = vst [vmem:[%s454 + $0x70] sm:$0xff] %v2297
          %2314 = vst [vmem:[%s454 + $0x78] sm:$0xff] %v2298
        $region88: #{simple_gnn_forward.1} parent=79 // pred_fallthru
          _
      $region80: #{simple_gnn_forward.1} parent=67 // pred_fallthru
        _
      %p2315 = scmp.eq.s32.totalorder %s28, 2
      %s2316 = scalar_select %p2315, %s29, 0
      %s2317 = smul.u32 16, %s2316
      %p2318 = scmp.lt.s32.totalorder %s2317, 15
      %s2319 = scalar_select %p2318, %s2317, 15
      %s2320 = smul.addr %s2319, 8
      %s2321 = scalar_lea.vmem %s12, %s2320
      // Predicated region
      $region89: #{simple_gnn_forward.1} parent=67 // pred_check
        %p2322 = pneg %p323
      $region90: #{simple_gnn_forward.1} parent=67 // pred_check_branch
        %2324 = sbr.rel (%p2322) target = $region92
      $region91: #{simple_gnn_forward.1} parent=67 // pred_region
        %p2325 = scmp.eq.s32.totalorder %s28, 2
        %s2326 = scalar_select %p2325, %s29, 0
        %s2327 = smul.u32 16, %s2326
      $region92: #{simple_gnn_forward.1} parent=67 // pred_fallthru
        _
    $region68: #{simple_gnn_forward.1} parent=5 // pred_fallthru
      _
    %p2328 = scmp.le.s32.totalorder 2, %s18
    // Predicated region
    $region93: #{simple_gnn_forward.1} parent=5 // pred_check
      %p2329 = pneg %p2328
    $region94: #{simple_gnn_forward.1} parent=5 // pred_check_branch
      %2331 = sbr.rel (%p2329) target = $region96
    $region95: #{simple_gnn_forward.1} parent=5 // pred_region
      %s2332 = ssub.s32 %s18, 2
      // Predicated region
      $region97: #{simple_gnn_forward.1} parent=95 // pred_check
        %p2333 = pneg %p329
      $region98: #{simple_gnn_forward.1} parent=95 // pred_check_branch
        %2335 = sbr.rel (%p2333) target = $region100
      $region99: #{simple_gnn_forward.1} parent=95 // pred_region
        %p2336 = scmp.eq.s32.totalorder %s31, 2
        %s2337 = scalar_select %p2336, %s32, 0
        %s2338 = smul.u32 16, %s2337
        %p2339 = scmp.lt.s32.totalorder %s2338, 15
        %s2340 = scalar_select %p2339, %s2338, 15
        %s2341 = smul.addr %s2340, 8
        %s2342 = scalar_lea.vmem %s12, %s2341
      $region100: #{simple_gnn_forward.1} parent=95 // pred_fallthru
        _
    $region96: #{simple_gnn_forward.1} parent=5 // pred_fallthru
      _
  $region6: #{simple_gnn_forward.1} parent=0 // loop_footer
    %s22 = sadd.s32 1, %s18
  $region7: #{simple_gnn_forward.1} parent=0 // loop_footer_branch
    %17 = sbr.rel target = $region3
  $region8: #{simple_gnn_forward.1} parent=0 // loop_exit
    _

</llo_original>
